<compile_context>
chip_gen: v7x
topology: tpu7x:2x2x1
jax: 0.10.0
libtpu: 0.0.40
codegen_flags: <defaults>
</compile_context>

<pallas_src>
import functools
import math

import jax
import jax.numpy as jnp
from jax import lax
from jax.experimental import pallas as pl
from jax.experimental.pallas import tpu as pltpu

MEAN = (640.0, 476.23620605)
STD = (227.59802246, 65.00177002)
BN_EPS = 1e-5

_TARGET_BLOCK_COLS = 16384   # ~time-steps (lanes) per grid step


def _fold_bn(w, b, gamma, beta, rmean, rvar, channel_axis):
    """Fold eval-mode BatchNorm1d into the preceding conv weight / bias."""
    scale = gamma / jnp.sqrt(rvar + BN_EPS)
    shape = [1] * w.ndim
    shape[channel_axis] = -1
    return w * scale.reshape(shape), b * scale + (beta - rmean * scale)


def _effective_weights(params):
    """BN folding + input-norm folding, laid out channels-first for the kernel."""
    mean = jnp.asarray(MEAN, jnp.float32)
    std = jnp.asarray(STD, jnp.float32)

    w1, b1 = _fold_bn(params["conv1_w"], params["conv1_b"], params["bn1_g"],
                      params["bn1_b"], params["bn1_rm"], params["bn1_rv"], 0)
    wd2, b2 = _fold_bn(params["deconv_w"], params["deconv_b"], params["bn2_g"],
                       params["bn2_b"], params["bn2_rm"], params["bn2_rv"], 1)
    w3, b3 = _fold_bn(params["conv3_w"], params["conv3_b"], params["bn3_g"],
                      params["bn3_b"], params["bn3_rm"], params["bn3_rv"], 0)

    # Fold the input normalization (x - mean) / std into conv1.
    w1n = w1 / std[None, :, None]                                    # (32, 2, 3)
    b1n = b1 - jnp.sum(w1 * (mean / std)[None, :, None], axis=(1, 2))

    # conv1: one (32, 2) matrix per tap k; h1[:, t] = sum_k W1k @ x[:, t+k].
    w1c = jnp.transpose(w1n, (2, 0, 1))                              # (3, 32, 2)
    # deconv as flipped conv: h2[o, t] = sum_{k,i} Wd[i, o, 2-k] * h1[i, t+k-2];
    # weight element [o, 32*k + i] = Wd[i, o, 2-k].
    w2c = jnp.transpose(wd2[:, :, ::-1], (1, 2, 0)).reshape(32, 96)  # (32, 96)
    # last 1x1 conv.
    w3c = w3[:, :, 0]                                                # (2, 32)

    return (w1c,
            b1n.reshape(32, 1),
            w2c.astype(jnp.bfloat16),
            b2.reshape(32, 1),
            w3c.astype(jnp.bfloat16),
            b3.reshape(2, 1))


def _tcn_kernel(x_ref, y_ref, w1_ref, b1_ref, w2_ref, b2_ref, w3_ref, b3_ref,
                nmean_ref, ninv_ref, pred_ref, loss_ref, *, seq_len, real_cols):
    f32 = jnp.float32
    n = x_ref.shape[1]

    xf = x_ref[...]                                    # (2, n) raw coordinates
    # Forward taps x[:, t+1], x[:, t+2] (circular roll; the wrapped columns only
    # feed h1 columns that the validity mask below zeroes).
    x_p1 = pltpu.roll(xf, n - 1, axis=1)
    x_p2 = pltpu.roll(xf, n - 2, axis=1)

    # ---- l1_conv: Conv1d(2->32, k=3) [+ folded input-norm + BN] + ReLU ------
    # Tiny K=2 contractions, kept in f32 (inputs are un-normalized, O(1e3)).
    h1 = jnp.dot(w1_ref[0], xf, preferred_element_type=f32)
    h1 = h1 + jnp.dot(w1_ref[1], x_p1, preferred_element_type=f32)
    h1 = h1 + jnp.dot(w1_ref[2], x_p2, preferred_element_type=f32)

    # Columns with (t mod T) >= T-2 are invalid conv1 outputs (they would mix
    # adjacent sequences / use roll wrap-around) -> zero them.  The same zero
    # columns are the zero padding the transposed convolution needs.
    idx = lax.broadcasted_iota(jnp.int32, (1, n), 1)
    seq_mask = ((idx % seq_len) < (seq_len - 2)).astype(f32)
    h1 = jnp.maximum(h1 + b1_ref[...], 0.0) * seq_mask                # (32, n)

    # ---- l1_deconv: ConvTranspose1d(32->32, k=3) [+ folded BN] + ReLU -------
    h_m1 = pltpu.roll(h1, 1, axis=1)                    # h1[:, t-1]
    h_m2 = pltpu.roll(h1, 2, axis=1)                    # h1[:, t-2]
    hc = jnp.concatenate([h_m2.astype(jnp.bfloat16),
                          h_m1.astype(jnp.bfloat16),
                          h1.astype(jnp.bfloat16)], axis=0)           # (96, n)
    h2 = jnp.dot(w2_ref[...], hc, preferred_element_type=f32)
    h2 = jnp.maximum(h2 + b2_ref[...], 0.0)                           # (32, n)

    # ---- last: Conv1d(32->2, k=1) [+ folded BN] + ReLU ----------------------
    h3 = jnp.dot(w3_ref[...], h2.astype(jnp.bfloat16),
                 preferred_element_type=f32)
    h3 = jnp.maximum(h3 + b3_ref[...], 0.0)                           # (2, n)

    # Lane-dense prediction write (channels in sublanes, time in lanes).
    pred_ref[...] = h3

    # Per-block partial MSE sum; columns belonging to batch padding are masked.
    col = idx + pl.program_id(0) * n
    loss_mask = (col < real_cols).astype(f32)
    yn = (y_ref[...] - nmean_ref[...]) * ninv_ref[...]
    part = jnp.sum(((h3 - yn) ** 2) * loss_mask)
    loss_ref[...] = jnp.zeros((1, 128), f32) + part


def tcn_forward(pos_x, pos_y, params, block_b=None):
    """Fused TCN forward.  Returns (mse_loss, pred) with pred in NCL [B, 2, T]."""
    B, T, C = pos_x.shape
    assert C == 2 and T >= 3

    # Block sizing: ~16K columns/step amortizes the fixed per-step overhead while
    # keeping live intermediates well under v7x's 64 MiB VMEM.  Non-divisible
    # batches are zero-padded (and masked out of the loss).
    if block_b is None:
        tb_cap = max(1, _TARGET_BLOCK_COLS // T)
        num_blocks = -(-B // tb_cap)
        tb = -(-B // num_blocks)
    else:
        tb = int(block_b)
        num_blocks = -(-B // tb)
    if num_blocks > 1:
        # Lane (minor) dim of the (2, tb*T) blocks must be a multiple of 128.
        lane_mult = 128 // math.gcd(T, 128)
        tb = -(-tb // lane_mult) * lane_mult
        num_blocks = -(-B // tb)
    b_pad = num_blocks * tb
    n = tb * T

    # Channels-first flat slabs: (2, B*T), time in lanes (one XLA transpose).
    x2 = jnp.transpose(pos_x, (2, 0, 1)).reshape(2, B * T)
    y2 = jnp.transpose(pos_y, (2, 0, 1)).reshape(2, B * T)
    if b_pad != B:
        pad = ((0, 0), (0, (b_pad - B) * T))
        x2 = jnp.pad(x2, pad)
        y2 = jnp.pad(y2, pad)

    w1c, b1, w2c, b2, w3c, b3 = _effective_weights(params)
    nmean = jnp.asarray(MEAN, jnp.float32).reshape(2, 1)
    ninv = (1.0 / jnp.asarray(STD, jnp.float32)).reshape(2, 1)

    kernel = functools.partial(_tcn_kernel, seq_len=T, real_cols=B * T)

    def const_spec(shape):
        return pl.BlockSpec(shape, lambda i: (0,) * len(shape))

    grid_spec = pltpu.PrefetchScalarGridSpec(
        num_scalar_prefetch=0,
        grid=(num_blocks,),
        in_specs=[
            pl.BlockSpec((2, n), lambda i: (0, i)),     # x slab
            pl.BlockSpec((2, n), lambda i: (0, i)),     # y slab
            const_spec((3, 32, 2)),                     # conv1 taps (folded)
            const_spec((32, 1)),                        # conv1 bias
            const_spec((32, 96)),                       # deconv weight (bf16)
            const_spec((32, 1)),                        # deconv bias
            const_spec((2, 32)),                        # 1x1 conv weight (bf16)
            const_spec((2, 1)),                         # 1x1 conv bias
            const_spec((2, 1)),                         # target mean
            const_spec((2, 1)),                         # target 1/std
        ],
        out_specs=[
            pl.BlockSpec((2, n), lambda i: (0, i)),     # pred slab (2, b_pad*T)
            pl.BlockSpec((1, 128), lambda i: (i, 0)),   # loss partials
        ],
    )

    pred_flat, loss_parts = pl.pallas_call(
        kernel,
        out_shape=[jax.ShapeDtypeStruct((2, b_pad * T), jnp.float32),
                   jax.ShapeDtypeStruct((num_blocks, 128), jnp.float32)],
        grid_spec=grid_spec,
        compiler_params=pltpu.CompilerParams(
            dimension_semantics=("parallel",),
            vmem_limit_bytes=48 * 1024 * 1024),
    )(x2, y2, w1c, b1, w2c, b2, w3c, b3, nmean, ninv)

    pred = jnp.transpose(pred_flat.reshape(2, b_pad, T)[:, :B, :], (1, 0, 2))
    loss = jnp.sum(loss_parts[:, 0]) / float(B * 2 * T)
    return loss, pred


def tcn_reference(pos_x, pos_y, params):
    """Pure-JAX reference: explicit eval-mode BN, lax convolutions (NCL)."""
    mean = jnp.asarray(MEAN, jnp.float32)
    std = jnp.asarray(STD, jnp.float32)
    xn = jnp.transpose((pos_x - mean) / std, (0, 2, 1))
    yn = jnp.transpose((pos_y - mean) / std, (0, 2, 1))
    dn = ("NCH", "OIH", "NCH")
    prec = lax.Precision.HIGHEST

    def bn(z, g, b, rm, rv):
        return ((z - rm[None, :, None]) * (g / jnp.sqrt(rv + BN_EPS))[None, :, None]
                + b[None, :, None])

    h = lax.conv_general_dilated(xn, params["conv1_w"], (1,), "VALID",
                                 dimension_numbers=dn, precision=prec)
    h = jax.nn.relu(bn(h + params["conv1_b"][None, :, None],
                       params["bn1_g"], params["bn1_b"],
                       params["bn1_rm"], params["bn1_rv"]))

    # ConvTranspose1d(k=3, s=1, p=0) == VALID conv over the input zero-padded
    # by 2 with the kernel flipped in time and in/out channels swapped.
    wd = params["deconv_w"]
    wc = jnp.transpose(wd[:, :, ::-1], (1, 0, 2))
    h = lax.conv_general_dilated(h, wc, (1,), [(2, 2)],
                                 dimension_numbers=dn, precision=prec)
    h = jax.nn.relu(bn(h + params["deconv_b"][None, :, None],
                       params["bn2_g"], params["bn2_b"],
                       params["bn2_rm"], params["bn2_rv"]))

    h = lax.conv_general_dilated(h, params["conv3_w"], (1,), "VALID",
                                 dimension_numbers=dn, precision=prec)
    h = jax.nn.relu(bn(h + params["conv3_b"][None, :, None],
                       params["bn3_g"], params["bn3_b"],
                       params["bn3_rm"], params["bn3_rv"]))

    loss = jnp.mean((h - yn) ** 2)
    return loss, h


if __name__ == "__main__":
    f32 = jnp.float32
    B, T = 8, 128
    keys = jax.random.split(jax.random.PRNGKey(0), 20)

    scale_in = jnp.asarray([[200.0, 60.0]], f32)
    offset_in = jnp.asarray([[640.0, 476.0]], f32)
    pos_x = jax.random.normal(keys[0], (B, T, 2), f32) * scale_in + offset_in
    pos_y = jax.random.normal(keys[1], (B, T, 2), f32) * scale_in + offset_in

    params = {
        "conv1_w": 0.3 * jax.random.normal(keys[2], (32, 2, 3), f32),
        "conv1_b": 0.1 * jax.random.normal(keys[3], (32,), f32),
        "bn1_g": 1.0 + 0.1 * jax.random.normal(keys[4], (32,), f32),
        "bn1_b": 0.1 * jax.random.normal(keys[5], (32,), f32),
        "bn1_rm": 0.1 * jax.random.normal(keys[6], (32,), f32),
        "bn1_rv": 1.0 + 0.1 * jnp.abs(jax.random.normal(keys[7], (32,), f32)),
        "deconv_w": 0.15 * jax.random.normal(keys[8], (32, 32, 3), f32),
        "deconv_b": 0.1 * jax.random.normal(keys[9], (32,), f32),
        "bn2_g": 1.0 + 0.1 * jax.random.normal(keys[10], (32,), f32),
        "bn2_b": 0.1 * jax.random.normal(keys[11], (32,), f32),
        "bn2_rm": 0.1 * jax.random.normal(keys[12], (32,), f32),
        "bn2_rv": 1.0 + 0.1 * jnp.abs(jax.random.normal(keys[13], (32,), f32)),
        "conv3_w": 0.3 * jax.random.normal(keys[14], (2, 32, 1), f32),
        "conv3_b": 0.1 * jax.random.normal(keys[15], (2,), f32),
        "bn3_g": 1.0 + 0.1 * jax.random.normal(keys[16], (2,), f32),
        "bn3_b": 0.1 * jax.random.normal(keys[17], (2,), f32),
        "bn3_rm": 0.1 * jax.random.normal(keys[18], (2,), f32),
        "bn3_rv": 1.0 + 0.1 * jnp.abs(jax.random.normal(keys[19], (2,), f32)),
    }

    ref_loss, ref_pred = tcn_reference(pos_x, pos_y, params)

    # Three configs: default block sizing, an even 2-block grid (v7x megacore
    # friendly), and a non-divisible split exercising batch padding + loss mask.
    # Tolerance 3e-2: the deconv / 1x1-conv matmuls use bf16 operands (f32 accum).
    for bb in (None, 4, 3):
        fwd = jax.jit(functools.partial(tcn_forward, block_b=bb))
        loss, pred = fwd(pos_x, pos_y, params)
        jax.block_until_ready((loss, pred))
        assert pred.shape == (B, 2, T)
        assert jnp.allclose(pred, ref_pred, atol=3e-2, rtol=3e-2), \
            f"pred mismatch (block_b={bb})"
        assert jnp.allclose(loss, ref_loss, atol=3e-2, rtol=3e-2), \
            f"loss mismatch (block_b={bb})"

    print("KERNEL_OK")
</pallas_src>

<mosaic_0001>
module attributes {stable_mosaic.version = 11 : i64} {
  func.func @_tcn_kernel(%arg0: i32, %arg1: memref<2x1024xf32, #tpu.memory_space<vmem>>, %arg2: memref<2x1024xf32, #tpu.memory_space<vmem>>, %arg3: memref<3x32x2xf32, #tpu.memory_space<vmem>>, %arg4: memref<32x1xf32, #tpu.memory_space<vmem>>, %arg5: memref<32x96xbf16, #tpu.memory_space<vmem>>, %arg6: memref<32x1xf32, #tpu.memory_space<vmem>>, %arg7: memref<2x32xbf16, #tpu.memory_space<vmem>>, %arg8: memref<2x1xf32, #tpu.memory_space<vmem>>, %arg9: memref<2x1xf32, #tpu.memory_space<vmem>>, %arg10: memref<2x1xf32, #tpu.memory_space<vmem>>, %arg11: memref<2x1024xf32, #tpu.memory_space<vmem>>, %arg12: memref<1x128xf32, #tpu.memory_space<vmem>>) attributes {dimension_semantics = [#tpu.dimension_semantics<parallel>], iteration_bounds = array<i64: 1>, scalar_prefetch = 0 : i64, scratch_operands = 0 : i64, tpu.core_type = #tpu.core_type<tc>, window_params = [{transform_indices = @transform_0, window_bounds = array<i64: 2, 1024>}, {transform_indices = @transform_1, window_bounds = array<i64: 2, 1024>}, {pipeline_mode = #tpu.pipeline_mode<synchronous>, transform_indices = @transform_2, window_bounds = array<i64: 3, 32, 2>}, {pipeline_mode = #tpu.pipeline_mode<synchronous>, transform_indices = @transform_3, window_bounds = array<i64: 32, 1>}, {pipeline_mode = #tpu.pipeline_mode<synchronous>, transform_indices = @transform_4, window_bounds = array<i64: 32, 96>}, {pipeline_mode = #tpu.pipeline_mode<synchronous>, transform_indices = @transform_5, window_bounds = array<i64: 32, 1>}, {pipeline_mode = #tpu.pipeline_mode<synchronous>, transform_indices = @transform_6, window_bounds = array<i64: 2, 32>}, {pipeline_mode = #tpu.pipeline_mode<synchronous>, transform_indices = @transform_7, window_bounds = array<i64: 2, 1>}, {pipeline_mode = #tpu.pipeline_mode<synchronous>, transform_indices = @transform_8, window_bounds = array<i64: 2, 1>}, {pipeline_mode = #tpu.pipeline_mode<synchronous>, transform_indices = @transform_9, window_bounds = array<i64: 2, 1>}, {transform_indices = @transform_10, window_bounds = array<i64: 2, 1024>}, {transform_indices = @transform_11, window_bounds = array<i64: 1, 128>}]} {
    %c0 = arith.constant 0 : index
    %c0_0 = arith.constant 0 : index
    %0 = vector.load %arg1[%c0, %c0_0] : memref<2x1024xf32, #tpu.memory_space<vmem>>, vector<2x1024xf32>
    %c1023_i32 = arith.constant 1023 : i32
    %1 = tpu.dynamic_rotate %0 by %c1023_i32 dim 1 : vector<2x1024xf32>, i32 -> vector<2x1024xf32>
    %c1022_i32 = arith.constant 1022 : i32
    %2 = tpu.dynamic_rotate %0 by %c1022_i32 dim 1 : vector<2x1024xf32>, i32 -> vector<2x1024xf32>
    %c0_1 = arith.constant 0 : index
    %c0_2 = arith.constant 0 : index
    %c0_3 = arith.constant 0 : index
    %3 = vector.load %arg3[%c0_1, %c0_2, %c0_3] : memref<3x32x2xf32, #tpu.memory_space<vmem>>, vector<1x32x2xf32>
    %4 = vector.shape_cast %3 : vector<1x32x2xf32> to vector<32x2xf32>
    %cst = arith.constant dense<0.000000e+00> : vector<32x1024xf32>
    %5 = tpu.matmul %4, %0, %cst {dimension_numbers = #tpu.dot_dimension_numbers<[1], [0], [0], [1], [0, 0, 1, 1], [], []>} : vector<32x2xf32>, vector<2x1024xf32>, vector<32x1024xf32> -> vector<32x1024xf32>
    %c1 = arith.constant 1 : index
    %c0_4 = arith.constant 0 : index
    %c0_5 = arith.constant 0 : index
    %6 = vector.load %arg3[%c1, %c0_4, %c0_5] : memref<3x32x2xf32, #tpu.memory_space<vmem>>, vector<1x32x2xf32>
    %7 = vector.shape_cast %6 : vector<1x32x2xf32> to vector<32x2xf32>
    %cst_6 = arith.constant dense<0.000000e+00> : vector<32x1024xf32>
    %8 = tpu.matmul %7, %1, %cst_6 {dimension_numbers = #tpu.dot_dimension_numbers<[1], [0], [0], [1], [0, 0, 1, 1], [], []>} : vector<32x2xf32>, vector<2x1024xf32>, vector<32x1024xf32> -> vector<32x1024xf32>
    %9 = arith.addf %5, %8 : vector<32x1024xf32>
    %c2 = arith.constant 2 : index
    %c0_7 = arith.constant 0 : index
    %c0_8 = arith.constant 0 : index
    %10 = vector.load %arg3[%c2, %c0_7, %c0_8] : memref<3x32x2xf32, #tpu.memory_space<vmem>>, vector<1x32x2xf32>
    %11 = vector.shape_cast %10 : vector<1x32x2xf32> to vector<32x2xf32>
    %cst_9 = arith.constant dense<0.000000e+00> : vector<32x1024xf32>
    %12 = tpu.matmul %11, %2, %cst_9 {dimension_numbers = #tpu.dot_dimension_numbers<[1], [0], [0], [1], [0, 0, 1, 1], [], []>} : vector<32x2xf32>, vector<2x1024xf32>, vector<32x1024xf32> -> vector<32x1024xf32>
    %13 = arith.addf %9, %12 : vector<32x1024xf32>
    %14 = tpu.iota {dimensions = array<i32: 1>} : vector<1x1024xi32>
    %c128_i32 = arith.constant 128 : i32
    %c0_i32 = arith.constant 0 : i32
    %15 = arith.cmpi eq, %c128_i32, %c0_i32 : i32
    %c1_i32 = arith.constant 1 : i32
    %16 = arith.select %15, %c1_i32, %c128_i32 : i32
    %17 = vector.broadcast %16 : i32 to vector<1x1024xi32>
    %18 = arith.remsi %14, %17 : vector<1x1024xi32>
    %c0_i32_10 = arith.constant 0 : i32
    %19 = vector.broadcast %c0_i32_10 : i32 to vector<1x1024xi32>
    %20 = arith.cmpi ne, %18, %19 : vector<1x1024xi32>
    %c0_i32_11 = arith.constant 0 : i32
    %21 = vector.broadcast %c0_i32_11 : i32 to vector<1x1024xi32>
    %22 = arith.cmpi slt, %18, %21 : vector<1x1024xi32>
    %c0_i32_12 = arith.constant 0 : i32
    %23 = arith.cmpi slt, %16, %c0_i32_12 : i32
    %24 = vector.broadcast %23 : i1 to vector<1x1024xi1>
    %25 = vector.broadcast %24 : vector<1x1024xi1> to vector<1x1024xi1>
    %26 = arith.xori %22, %25 : vector<1x1024xi1>
    %27 = arith.andi %26, %20 : vector<1x1024xi1>
    %28 = vector.broadcast %16 : i32 to vector<1x1024xi32>
    %29 = arith.addi %18, %28 : vector<1x1024xi32>
    %30 = arith.select %27, %29, %18 : vector<1x1024xi1>, vector<1x1024xi32>
    %c126_i32 = arith.constant 126 : i32
    %31 = vector.broadcast %c126_i32 : i32 to vector<1x1024xi32>
    %32 = arith.cmpi slt, %30, %31 : vector<1x1024xi32>
    %33 = arith.extui %32 : vector<1x1024xi1> to vector<1x1024xi32>
    %34 = arith.sitofp %33 : vector<1x1024xi32> to vector<1x1024xf32>
    %c0_13 = arith.constant 0 : index
    %c0_14 = arith.constant 0 : index
    %35 = vector.load %arg4[%c0_13, %c0_14] : memref<32x1xf32, #tpu.memory_space<vmem>>, vector<32x1xf32>
    %36 = vector.broadcast %35 : vector<32x1xf32> to vector<32x1024xf32>
    %37 = arith.addf %13, %36 : vector<32x1024xf32>
    %cst_15 = arith.constant 0.000000e+00 : f32
    %38 = vector.broadcast %cst_15 : f32 to vector<32x1024xf32>
    %39 = arith.maximumf %37, %38 : vector<32x1024xf32>
    %40 = vector.broadcast %34 : vector<1x1024xf32> to vector<32x1024xf32>
    %41 = arith.mulf %39, %40 : vector<32x1024xf32>
    %c1_i32_16 = arith.constant 1 : i32
    %42 = tpu.dynamic_rotate %41 by %c1_i32_16 dim 1 : vector<32x1024xf32>, i32 -> vector<32x1024xf32>
    %c2_i32 = arith.constant 2 : i32
    %43 = tpu.dynamic_rotate %41 by %c2_i32 dim 1 : vector<32x1024xf32>, i32 -> vector<32x1024xf32>
    %44 = arith.truncf %43 : vector<32x1024xf32> to vector<32x1024xbf16>
    %45 = arith.truncf %42 : vector<32x1024xf32> to vector<32x1024xbf16>
    %46 = arith.truncf %41 : vector<32x1024xf32> to vector<32x1024xbf16>
    %47 = tpu.concatenate %44, %45, %46 in 0 : vector<32x1024xbf16>, vector<32x1024xbf16>, vector<32x1024xbf16> -> vector<96x1024xbf16>
    %c0_17 = arith.constant 0 : index
    %c0_18 = arith.constant 0 : index
    %48 = vector.load %arg5[%c0_17, %c0_18] : memref<32x96xbf16, #tpu.memory_space<vmem>>, vector<32x96xbf16>
    %cst_19 = arith.constant dense<0.000000e+00> : vector<32x1024xf32>
    %49 = tpu.matmul %48, %47, %cst_19 {dimension_numbers = #tpu.dot_dimension_numbers<[1], [0], [0], [1], [0, 0, 1, 1], [], []>} : vector<32x96xbf16>, vector<96x1024xbf16>, vector<32x1024xf32> -> vector<32x1024xf32>
    %c0_20 = arith.constant 0 : index
    %c0_21 = arith.constant 0 : index
    %50 = vector.load %arg6[%c0_20, %c0_21] : memref<32x1xf32, #tpu.memory_space<vmem>>, vector<32x1xf32>
    %51 = vector.broadcast %50 : vector<32x1xf32> to vector<32x1024xf32>
    %52 = arith.addf %49, %51 : vector<32x1024xf32>
    %cst_22 = arith.constant 0.000000e+00 : f32
    %53 = vector.broadcast %cst_22 : f32 to vector<32x1024xf32>
    %54 = arith.maximumf %52, %53 : vector<32x1024xf32>
    %c0_23 = arith.constant 0 : index
    %c0_24 = arith.constant 0 : index
    %55 = vector.load %arg7[%c0_23, %c0_24] : memref<2x32xbf16, #tpu.memory_space<vmem>>, vector<2x32xbf16>
    %56 = arith.truncf %54 : vector<32x1024xf32> to vector<32x1024xbf16>
    %cst_25 = arith.constant dense<0.000000e+00> : vector<2x1024xf32>
    %57 = tpu.matmul %55, %56, %cst_25 {dimension_numbers = #tpu.dot_dimension_numbers<[1], [0], [0], [1], [0, 0, 1, 1], [], []>} : vector<2x32xbf16>, vector<32x1024xbf16>, vector<2x1024xf32> -> vector<2x1024xf32>
    %c0_26 = arith.constant 0 : index
    %c0_27 = arith.constant 0 : index
    %58 = vector.load %arg8[%c0_26, %c0_27] : memref<2x1xf32, #tpu.memory_space<vmem>>, vector<2x1xf32>
    %59 = vector.broadcast %58 : vector<2x1xf32> to vector<2x1024xf32>
    %60 = arith.addf %57, %59 : vector<2x1024xf32>
    %cst_28 = arith.constant 0.000000e+00 : f32
    %61 = vector.broadcast %cst_28 : f32 to vector<2x1024xf32>
    %62 = arith.maximumf %60, %61 : vector<2x1024xf32>
    %c0_29 = arith.constant 0 : index
    %c0_30 = arith.constant 0 : index
    %63 = vector.load %arg11[%c0_29, %c0_30] : memref<2x1024xf32, #tpu.memory_space<vmem>>, vector<2x1024xf32>
    tpu.vector_store %arg11[%c0_29, %c0_30], %62 {strides = array<i32>} : memref<2x1024xf32, #tpu.memory_space<vmem>>, vector<2x1024xf32>,
    %c1024_i32 = arith.constant 1024 : i32
    %64 = arith.muli %arg0, %c1024_i32 : i32
    %65 = vector.broadcast %64 : i32 to vector<1x1024xi32>
    %66 = arith.addi %14, %65 : vector<1x1024xi32>
    %c1024_i32_31 = arith.constant 1024 : i32
    %67 = vector.broadcast %c1024_i32_31 : i32 to vector<1x1024xi32>
    %68 = arith.cmpi slt, %66, %67 : vector<1x1024xi32>
    %69 = arith.extui %68 : vector<1x1024xi1> to vector<1x1024xi32>
    %70 = arith.sitofp %69 : vector<1x1024xi32> to vector<1x1024xf32>
    %c0_32 = arith.constant 0 : index
    %c0_33 = arith.constant 0 : index
    %71 = vector.load %arg2[%c0_32, %c0_33] : memref<2x1024xf32, #tpu.memory_space<vmem>>, vector<2x1024xf32>
    %c0_34 = arith.constant 0 : index
    %c0_35 = arith.constant 0 : index
    %72 = vector.load %arg9[%c0_34, %c0_35] : memref<2x1xf32, #tpu.memory_space<vmem>>, vector<2x1xf32>
    %73 = vector.broadcast %72 : vector<2x1xf32> to vector<2x1024xf32>
    %74 = arith.subf %71, %73 : vector<2x1024xf32>
    %c0_36 = arith.constant 0 : index
    %c0_37 = arith.constant 0 : index
    %75 = vector.load %arg10[%c0_36, %c0_37] : memref<2x1xf32, #tpu.memory_space<vmem>>, vector<2x1xf32>
    %76 = vector.broadcast %75 : vector<2x1xf32> to vector<2x1024xf32>
    %77 = arith.mulf %74, %76 : vector<2x1024xf32>
    %78 = arith.subf %62, %77 : vector<2x1024xf32>
    %79 = arith.mulf %78, %78 : vector<2x1024xf32>
    %80 = vector.broadcast %70 : vector<1x1024xf32> to vector<2x1024xf32>
    %81 = arith.mulf %79, %80 : vector<2x1024xf32>
    %82 = vector.shape_cast %81 : vector<2x1024xf32> to vector<1x2x1024xf32>
    %cst_38 = arith.constant dense<0.000000e+00> : vector<1xf32>
    %83 = vector.multi_reduction <add>, %82, %cst_38 [1, 2] : vector<1x2x1024xf32> to vector<1xf32>
    %84 = vector.shape_cast %83 : vector<1xf32> to vector<1x1x1xf32>
    %85 = vector.extract %84[0, 0, 0] : f32 from vector<1x1x1xf32>
    %cst_39 = arith.constant 0.000000e+00 : f32
    %86 = vector.broadcast %cst_39 : f32 to vector<1x128xf32>
    %87 = vector.broadcast %85 : f32 to vector<1x128xf32>
    %88 = arith.addf %86, %87 : vector<1x128xf32>
    %c0_40 = arith.constant 0 : index
    %c0_41 = arith.constant 0 : index
    %89 = vector.load %arg12[%c0_40, %c0_41] : memref<1x128xf32, #tpu.memory_space<vmem>>, vector<1x128xf32>
    tpu.vector_store %arg12[%c0_40, %c0_41], %88 {strides = array<i32>} : memref<1x128xf32, #tpu.memory_space<vmem>>, vector<1x128xf32>,
    return
  }
  func.func @transform_0(%arg0: i32) -> (i32, i32) {
    %c0_i32 = arith.constant 0 : i32
    %c0_i32_0 = arith.constant 0 : i32
    return %c0_i32, %arg0 : i32, i32
  }
  func.func @transform_1(%arg0: i32) -> (i32, i32) {
    %c0_i32 = arith.constant 0 : i32
    %c0_i32_0 = arith.constant 0 : i32
    return %c0_i32, %arg0 : i32, i32
  }
  func.func @transform_2(%arg0: i32) -> (i32, i32, i32) {
    %c0_i32 = arith.constant 0 : i32
    %c0_i32_0 = arith.constant 0 : i32
    %c0_i32_1 = arith.constant 0 : i32
    %c0_i32_2 = arith.constant 0 : i32
    return %c0_i32, %c0_i32_0, %c0_i32_1 : i32, i32, i32
  }
  func.func @transform_3(%arg0: i32) -> (i32, i32) {
    %c0_i32 = arith.constant 0 : i32
    %c0_i32_0 = arith.constant 0 : i32
    %c0_i32_1 = arith.constant 0 : i32
    return %c0_i32, %c0_i32_0 : i32, i32
  }
  func.func @transform_4(%arg0: i32) -> (i32, i32) {
    %c0_i32 = arith.constant 0 : i32
    %c0_i32_0 = arith.constant 0 : i32
    %c0_i32_1 = arith.constant 0 : i32
    return %c0_i32, %c0_i32_0 : i32, i32
  }
  func.func @transform_5(%arg0: i32) -> (i32, i32) {
    %c0_i32 = arith.constant 0 : i32
    %c0_i32_0 = arith.constant 0 : i32
    %c0_i32_1 = arith.constant 0 : i32
    return %c0_i32, %c0_i32_0 : i32, i32
  }
  func.func @transform_6(%arg0: i32) -> (i32, i32) {
    %c0_i32 = arith.constant 0 : i32
    %c0_i32_0 = arith.constant 0 : i32
    %c0_i32_1 = arith.constant 0 : i32
    return %c0_i32, %c0_i32_0 : i32, i32
  }
  func.func @transform_7(%arg0: i32) -> (i32, i32) {
    %c0_i32 = arith.constant 0 : i32
    %c0_i32_0 = arith.constant 0 : i32
    %c0_i32_1 = arith.constant 0 : i32
    return %c0_i32, %c0_i32_0 : i32, i32
  }
  func.func @transform_8(%arg0: i32) -> (i32, i32) {
    %c0_i32 = arith.constant 0 : i32
    %c0_i32_0 = arith.constant 0 : i32
    %c0_i32_1 = arith.constant 0 : i32
    return %c0_i32, %c0_i32_0 : i32, i32
  }
  func.func @transform_9(%arg0: i32) -> (i32, i32) {
    %c0_i32 = arith.constant 0 : i32
    %c0_i32_0 = arith.constant 0 : i32
    %c0_i32_1 = arith.constant 0 : i32
    return %c0_i32, %c0_i32_0 : i32, i32
  }
  func.func @transform_10(%arg0: i32) -> (i32, i32) {
    %c0_i32 = arith.constant 0 : i32
    %c0_i32_0 = arith.constant 0 : i32
    return %c0_i32, %arg0 : i32, i32
  }
  func.func @transform_11(%arg0: i32) -> (i32, i32) {
    %c0_i32 = arith.constant 0 : i32
    %c0_i32_0 = arith.constant 0 : i32
    return %arg0, %c0_i32 : i32, i32
  }
}

</mosaic_0001>

<llo_original>
// kernel: tcn_forward.1
$region0: #{tcn_forward.1}
  #allocation0 [shape = 'u32[]', space=smem, size = 0x4, offset = 0x4, fixed_abs, tag = 'smem constant byte address 0x4 - core index']
  #allocation1 [shape = 'u32[144,128]{1,0:T(1,128)}', space=vmem, size = 0x12000, scoped, tag = 'internal scratch']
  %s0 = inlined_call_operand.vmem [shape: f32[2,1024], index: 0, kind: input, shape index: {}]
  %s1 = inlined_call_operand.vmem [shape: f32[2,1024], index: 1, kind: input, shape index: {}]
  %s2 = inlined_call_operand.vmem [shape: f32[3,32,2], index: 2, kind: input, shape index: {}]
  %s3 = inlined_call_operand.vmem [shape: f32[32,1], index: 3, kind: input, shape index: {}]
  %s4 = inlined_call_operand.vmem [shape: bf16[32,96], index: 4, kind: input, shape index: {}]
  %s5 = inlined_call_operand.vmem [shape: f32[32,1], index: 5, kind: input, shape index: {}]
  %s6 = inlined_call_operand.vmem [shape: bf16[2,32], index: 6, kind: input, shape index: {}]
  %s7 = inlined_call_operand.vmem [shape: f32[2,1], index: 7, kind: input, shape index: {}]
  %s8 = inlined_call_operand.vmem [shape: f32[2,1], index: 8, kind: input, shape index: {}]
  %s9 = inlined_call_operand.vmem [shape: f32[2,1], index: 9, kind: input, shape index: {}]
  %s10 = inlined_call_operand.hbm [shape: f32[2,1024], index: 10, kind: output, shape index: {0}]
  %s11 = inlined_call_operand.vmem [shape: f32[1,128], index: 11, kind: output, shape index: {1}]
  %12 = xla_tuple %s10, %s11
  %s13 = sld [smem:[#allocation0]]
  $region58: #{tcn_forward.1} parent=0
    _
  %s15 = ssub.s32 1, %s13
  %s16 = scalar_select 0, %s15, %s13
  $region1: #{tcn_forward.1} parent=0
    #allocation2 [shape = 'u8[8192]{0}', space=vmem, size = 0x2000, scoped, tag = 'output window, operand 0, single buffered']
    #allocation3 [shape = 's32[1]{0}', space=sflag, size = 0x4, scoped, tag = 'scoped memory for tcn_forward.1']
    %17 = vsyncpa [#allocation3], 0
    // Predicated region
    $region2: #{tcn_forward.1} parent=1 // pred_check
      _
    $region3: #{tcn_forward.1} parent=1 // pred_check_branch
      %19 = sbr.rel (0) target = $region5
    $region4: #{tcn_forward.1} parent=1 // pred_region
      _
    $region5: #{tcn_forward.1} parent=1 // pred_fallthru
      _
    // Predicated region
    $region6: #{tcn_forward.1} parent=1 // pred_check
      _
    $region7: #{tcn_forward.1} parent=1 // pred_check_branch
      %21 = sbr.rel (0) target = $region9
    $region8: #{tcn_forward.1} parent=1 // pred_region
      _
    $region9: #{tcn_forward.1} parent=1 // pred_fallthru
      _
    // Predicated region
    $region10: #{tcn_forward.1} parent=1 // pred_check
      _
    $region11: #{tcn_forward.1} parent=1 // pred_check_branch
      %23 = sbr.rel (0) target = $region13
    $region12: #{tcn_forward.1} parent=1 // pred_region
      _
    $region13: #{tcn_forward.1} parent=1 // pred_fallthru
      _
    // Predicated region
    $region14: #{tcn_forward.1} parent=1 // pred_check
      _
    $region15: #{tcn_forward.1} parent=1 // pred_check_branch
      %25 = sbr.rel (0) target = $region17
    $region16: #{tcn_forward.1} parent=1 // pred_region
      _
    $region17: #{tcn_forward.1} parent=1 // pred_fallthru
      _
    // Predicated region
    $region18: #{tcn_forward.1} parent=1 // pred_check
      _
    $region19: #{tcn_forward.1} parent=1 // pred_check_branch
      %27 = sbr.rel (0) target = $region21
    $region20: #{tcn_forward.1} parent=1 // pred_region
      _
    $region21: #{tcn_forward.1} parent=1 // pred_fallthru
      _
    // Predicated region
    $region22: #{tcn_forward.1} parent=1 // pred_check
      _
    $region23: #{tcn_forward.1} parent=1 // pred_check_branch
      %29 = sbr.rel (0) target = $region25
    $region24: #{tcn_forward.1} parent=1 // pred_region
      _
    $region25: #{tcn_forward.1} parent=1 // pred_fallthru
      _
    // Predicated region
    $region26: #{tcn_forward.1} parent=1 // pred_check
      _
    $region27: #{tcn_forward.1} parent=1 // pred_check_branch
      %31 = sbr.rel (0) target = $region29
    $region28: #{tcn_forward.1} parent=1 // pred_region
      _
    $region29: #{tcn_forward.1} parent=1 // pred_fallthru
      _
    // Predicated region
    $region30: #{tcn_forward.1} parent=1 // pred_check
      _
    $region31: #{tcn_forward.1} parent=1 // pred_check_branch
      %33 = sbr.rel (0) target = $region33
    $region32: #{tcn_forward.1} parent=1 // pred_region
      _
    $region33: #{tcn_forward.1} parent=1 // pred_fallthru
      _
    // Predicated region
    $region34: #{tcn_forward.1} parent=1 // pred_check
      _
    $region35: #{tcn_forward.1} parent=1 // pred_check_branch
      %35 = sbr.rel (0) target = $region37
    $region36: #{tcn_forward.1} parent=1 // pred_region
      _
    $region37: #{tcn_forward.1} parent=1 // pred_fallthru
      _
    // Predicated region
    $region38: #{tcn_forward.1} parent=1 // pred_check
      _
    $region39: #{tcn_forward.1} parent=1 // pred_check_branch
      %37 = sbr.rel (0) target = $region41
    $region40: #{tcn_forward.1} parent=1 // pred_region
      _
    $region41: #{tcn_forward.1} parent=1 // pred_fallthru
      _
    %v39 = vld [vmem:[%s0] sm:$0xff]
    %v40 = vld [vmem:[%s0 + $0x8] sm:$0xff]
    %v43 = vcombine.high %v39, %v39
    %v45 = vunpack.c.l.s4 1983009808
    %v46 = vunpack.c.0.s8 %v45
    %v47 = vlaneseq
    %v48 = vshrl.u32 %v47, 7
    %v49 = vsub.s32 %v46, %v48
    %v50 = vrot.slane %v39, %v49
    %v52 = vunpack.c.l.s4 1983009808
    %v53 = vunpack.c.0.s8 %v52
    %v54 = vlaneseq
    %v55 = vshrl.u32 %v54, 7
    %v56 = vsub.s32 %v53, %v55
    %v57 = vrot.slane %v43, %v56
    %v58 = vcombine.high %v50, %v50
    %v59 = vcombine.high %v57, %v57
    %v60 = vcombine.high %v40, %v40
    %v62 = vunpack.c.l.s4 1983009808
    %v63 = vunpack.c.0.s8 %v62
    %v64 = vlaneseq
    %v65 = vshrl.u32 %v64, 7
    %v66 = vsub.s32 %v63, %v65
    %v67 = vrot.slane %v40, %v66
    %v69 = vunpack.c.l.s4 1983009808
    %v70 = vunpack.c.0.s8 %v69
    %v71 = vlaneseq
    %v72 = vshrl.u32 %v71, 7
    %v73 = vsub.s32 %v70, %v72
    %v74 = vrot.slane %v60, %v73
    %v75 = vcombine.high %v67, %v67
    %v76 = vcombine.high %v74, %v74
    %85 = vrot.lane.b32.xlu0 %v50, 127
    %v86 = vpop.permute.xlu0 %85
    %87 = vrot.lane.b32.xlu0 %v58, 127
    %v88 = vpop.permute.xlu0 %87
    %89 = vrot.lane.b32.xlu0 %v57, 127
    %v90 = vpop.permute.xlu0 %89
    %91 = vrot.lane.b32.xlu0 %v59, 127
    %v92 = vpop.permute.xlu0 %91
    %93 = vrot.lane.b32.xlu0 %v67, 127
    %v94 = vpop.permute.xlu0 %93
    %95 = vrot.lane.b32.xlu0 %v75, 127
    %v96 = vpop.permute.xlu0 %95
    %97 = vrot.lane.b32.xlu0 %v74, 127
    %v98 = vpop.permute.xlu0 %97
    %99 = vrot.lane.b32.xlu0 %v76, 127
    %v100 = vpop.permute.xlu0 %99
    %v101 = vlaneseq
    %v102 = vand.u32 %v101, 127
    %vm103 = vcmp.lt.s32.totalorder %v102, 127
    %v104 = vsel %vm103, %v98, %v100
    %v105 = vsel %vm103, %v96, %v98
    %v106 = vsel %vm103, %v94, %v96
    %v107 = vsel %vm103, %v92, %v94
    %v108 = vsel %vm103, %v90, %v92
    %v109 = vsel %vm103, %v88, %v90
    %v110 = vsel %vm103, %v86, %v88
    %v111 = vsel %vm103, %v100, %v86
    %112 = vrot.lane.b32.xlu0 %v50, 126
    %v113 = vpop.permute.xlu0 %112
    %114 = vrot.lane.b32.xlu0 %v58, 126
    %v115 = vpop.permute.xlu0 %114
    %116 = vrot.lane.b32.xlu0 %v57, 126
    %v117 = vpop.permute.xlu0 %116
    %118 = vrot.lane.b32.xlu0 %v59, 126
    %v119 = vpop.permute.xlu0 %118
    %120 = vrot.lane.b32.xlu0 %v67, 126
    %v121 = vpop.permute.xlu0 %120
    %122 = vrot.lane.b32.xlu0 %v75, 126
    %v123 = vpop.permute.xlu0 %122
    %124 = vrot.lane.b32.xlu0 %v74, 126
    %v125 = vpop.permute.xlu0 %124
    %126 = vrot.lane.b32.xlu0 %v76, 126
    %v127 = vpop.permute.xlu0 %126
    %vm128 = vcmp.lt.s32.totalorder %v102, 126
    %v129 = vsel %vm128, %v125, %v127
    %v130 = vsel %vm128, %v123, %v125
    %v131 = vsel %vm128, %v121, %v123
    %v132 = vsel %vm128, %v119, %v121
    %v133 = vsel %vm128, %v117, %v119
    %v134 = vsel %vm128, %v115, %v117
    %v135 = vsel %vm128, %v113, %v115
    %v136 = vsel %vm128, %v127, %v113
    %v137 = vld [vmem:[%s2] sm:$0xff]
    %v138 = vld [vmem:[%s2 + $0x8] sm:$0xff]
    %v139 = vld [vmem:[%s2 + $0x10] sm:$0xff]
    %v140 = vld [vmem:[%s2 + $0x18] sm:$0xff]
    %s141 = scalar_lea.vmem %s2, 32
    %v142 = vld [vmem:[%s141] sm:$0xff]
    %v143 = vld [vmem:[%s141 + $0x8] sm:$0xff]
    %v144 = vld [vmem:[%s141 + $0x10] sm:$0xff]
    %v145 = vld [vmem:[%s141 + $0x18] sm:$0xff]
    %vm146 = vcmask 15360
    %v148 = vsel %vm146, %v142, 0
    %v151 = vsel %vm146, %v143, 0
    %v154 = vsel %vm146, %v144, 0
    %v157 = vsel %vm146, %v145, 0
    %vm159 = vcmask 1041408
    %v161 = vsel %vm159, %v110, 0
    %v164 = vsel %vm159, %v109, 0
    %v167 = vsel %vm159, %v108, 0
    %v170 = vsel %vm159, %v107, 0
    %v173 = vsel %vm159, %v106, 0
    %v176 = vsel %vm159, %v105, 0
    %v179 = vsel %vm159, %v104, 0
    %v182 = vsel %vm159, %v111, 0
    %184 = vmatprep.subr.mxu0 %v164
    %185 = vmatpush1.msra.mxu0 %v161
    %186 = vmatprep.subr.mxu0 0.0
    %187 = vmatpush1.msra.mxu0 0.0
    %188 = vmatprep.subr.mxu0 0.0
    %189 = vmatpush1.msra.mxu0 0.0
    %190 = vmatprep.subr.mxu0 0.0
    %191 = vmatpush1.msra.mxu0 0.0
    %192 = vmatprep.subr.mxu0 0.0
    %193 = vmatpush1.msra.mxu0 0.0
    %194 = vmatprep.subr.mxu0 0.0
    %195 = vmatpush1.msra.mxu0 0.0
    %196 = vmatprep.subr.mxu0 0.0
    %197 = vmatpush1.msra.mxu0 0.0
    %198 = vmatprep.subr.mxu0 0.0
    %199 = vmatpush1.msra.mxu0 0.0
    %200 = vmatprep.subr.mxu0 0.0
    %201 = vmatpush1.msra.mxu0 0.0
    %202 = vmatprep.subr.mxu0 0.0
    %203 = vmatpush1.msra.mxu0 0.0
    %204 = vmatprep.subr.mxu0 0.0
    %205 = vmatpush1.msra.mxu0 0.0
    %206 = vmatprep.subr.mxu0 0.0
    %207 = vmatpush1.msra.mxu0 0.0
    %208 = vmatprep.subr.mxu0 0.0
    %209 = vmatpush1.msra.mxu0 0.0
    %210 = vmatprep.subr.mxu0 0.0
    %211 = vmatpush1.msra.mxu0 0.0
    %212 = vmatprep.subr.mxu0 0.0
    %213 = vmatpush1.msra.mxu0 0.0
    %214 = vmatprep.subr.mxu0 0.0
    %215 = vmatpush1.msra.mxu0 0.0
    %216 = vmatprep.subr.mxu0 0.0
    %217 = vmatpush1.msra.mxu0 0.0
    %218 = vmatprep.subr.mxu0 0.0
    %219 = vmatpush1.msra.mxu0 0.0
    %220 = vmatprep.subr.mxu0 0.0
    %221 = vmatpush1.msra.mxu0 0.0
    %222 = vmatprep.subr.mxu0 0.0
    %223 = vmatpush1.msra.mxu0 0.0
    %224 = vmatprep.subr.mxu0 0.0
    %225 = vmatpush1.msra.mxu0 0.0
    %226 = vmatprep.subr.mxu0 0.0
    %227 = vmatpush1.msra.mxu0 0.0
    %228 = vmatprep.subr.mxu0 0.0
    %229 = vmatpush1.msra.mxu0 0.0
    %230 = vmatprep.subr.mxu0 0.0
    %231 = vmatpush1.msra.mxu0 0.0
    %232 = vmatprep.subr.mxu0 0.0
    %233 = vmatpush1.msra.mxu0 0.0
    %234 = vmatprep.subr.mxu0 0.0
    %235 = vmatpush1.msra.mxu0 0.0
    %236 = vmatprep.subr.mxu0 0.0
    %237 = vmatpush1.msra.mxu0 0.0
    %238 = vmatprep.subr.mxu0 0.0
    %239 = vmatpush1.msra.mxu0 0.0
    %240 = vmatprep.subr.mxu0 0.0
    %241 = vmatpush1.msra.mxu0 0.0
    %242 = vmatprep.subr.mxu0 0.0
    %243 = vmatpush1.msra.mxu0 0.0
    %244 = vmatprep.subr.mxu0 0.0
    %245 = vmatpush1.msra.mxu0 0.0
    %246 = vmatprep.subr.mxu0 0.0
    %247 = vmatpush1.msra.mxu0 0.0
    %248 = vmatprep.mubr.f32.mxu0 0.0
    %249 = vmatmul.mubr.f32.gmra.mrb[0].mxu0 %v148
    %v250 = vpop.f32.mrb[0].mxu0
    %v251 = vadd.f32 0.0, %v250
    %v252 = vpop.f32.mrb[0].mxu0
    %v253 = vadd.f32 0.0, %v252
    %254 = vmatprep.mubr.f32.mxu0 0.0
    %255 = vmatmul.mubr.f32.gmra.mrb[0].mxu0 %v151
    %v256 = vpop.f32.mrb[0].mxu0
    %v257 = vadd.f32 0.0, %v256
    %v258 = vpop.f32.mrb[0].mxu0
    %v259 = vadd.f32 0.0, %v258
    %260 = vmatprep.mubr.f32.mxu0 0.0
    %261 = vmatmul.mubr.f32.gmra.mrb[0].mxu0 %v154
    %v262 = vpop.f32.mrb[0].mxu0
    %v263 = vadd.f32 0.0, %v262
    %v264 = vpop.f32.mrb[0].mxu0
    %v265 = vadd.f32 0.0, %v264
    %266 = vmatprep.mubr.f32.mxu0 0.0
    %267 = vmatmul.mubr.f32.gmra.mrb[0].mxu0 %v157
    %v268 = vpop.f32.mrb[0].mxu0
    %v269 = vadd.f32 0.0, %v268
    %v270 = vpop.f32.mrb[0].mxu0
    %v271 = vadd.f32 0.0, %v270
    %272 = vdwg.mxu0
    %273 = vmatprep.subr.mxu0 %v170
    %274 = vmatpush1.msra.mxu0 %v167
    %275 = vmatprep.subr.mxu0 0.0
    %276 = vmatpush1.msra.mxu0 0.0
    %277 = vmatprep.subr.mxu0 0.0
    %278 = vmatpush1.msra.mxu0 0.0
    %279 = vmatprep.subr.mxu0 0.0
    %280 = vmatpush1.msra.mxu0 0.0
    %281 = vmatprep.subr.mxu0 0.0
    %282 = vmatpush1.msra.mxu0 0.0
    %283 = vmatprep.subr.mxu0 0.0
    %284 = vmatpush1.msra.mxu0 0.0
    %285 = vmatprep.subr.mxu0 0.0
    %286 = vmatpush1.msra.mxu0 0.0
    %287 = vmatprep.subr.mxu0 0.0
    %288 = vmatpush1.msra.mxu0 0.0
    %289 = vmatprep.subr.mxu0 0.0
    %290 = vmatpush1.msra.mxu0 0.0
    %291 = vmatprep.subr.mxu0 0.0
    %292 = vmatpush1.msra.mxu0 0.0
    %293 = vmatprep.subr.mxu0 0.0
    %294 = vmatpush1.msra.mxu0 0.0
    %295 = vmatprep.subr.mxu0 0.0
    %296 = vmatpush1.msra.mxu0 0.0
    %297 = vmatprep.subr.mxu0 0.0
    %298 = vmatpush1.msra.mxu0 0.0
    %299 = vmatprep.subr.mxu0 0.0
    %300 = vmatpush1.msra.mxu0 0.0
    %301 = vmatprep.subr.mxu0 0.0
    %302 = vmatpush1.msra.mxu0 0.0
    %303 = vmatprep.subr.mxu0 0.0
    %304 = vmatpush1.msra.mxu0 0.0
    %305 = vmatprep.subr.mxu0 0.0
    %306 = vmatpush1.msra.mxu0 0.0
    %307 = vmatprep.subr.mxu0 0.0
    %308 = vmatpush1.msra.mxu0 0.0
    %309 = vmatprep.subr.mxu0 0.0
    %310 = vmatpush1.msra.mxu0 0.0
    %311 = vmatprep.subr.mxu0 0.0
    %312 = vmatpush1.msra.mxu0 0.0
    %313 = vmatprep.subr.mxu0 0.0
    %314 = vmatpush1.msra.mxu0 0.0
    %315 = vmatprep.subr.mxu0 0.0
    %316 = vmatpush1.msra.mxu0 0.0
    %317 = vmatprep.subr.mxu0 0.0
    %318 = vmatpush1.msra.mxu0 0.0
    %319 = vmatprep.subr.mxu0 0.0
    %320 = vmatpush1.msra.mxu0 0.0
    %321 = vmatprep.subr.mxu0 0.0
    %322 = vmatpush1.msra.mxu0 0.0
    %323 = vmatprep.subr.mxu0 0.0
    %324 = vmatpush1.msra.mxu0 0.0
    %325 = vmatprep.subr.mxu0 0.0
    %326 = vmatpush1.msra.mxu0 0.0
    %327 = vmatprep.subr.mxu0 0.0
    %328 = vmatpush1.msra.mxu0 0.0
    %329 = vmatprep.subr.mxu0 0.0
    %330 = vmatpush1.msra.mxu0 0.0
    %331 = vmatprep.subr.mxu0 0.0
    %332 = vmatpush1.msra.mxu0 0.0
    %333 = vmatprep.subr.mxu0 0.0
    %334 = vmatpush1.msra.mxu0 0.0
    %335 = vmatprep.subr.mxu0 0.0
    %336 = vmatpush1.msra.mxu0 0.0
    %337 = vmatprep.mubr.f32.mxu0 0.0
    %338 = vmatmul.mubr.f32.gmra.mrb[0].mxu0 %v148
    %v339 = vpop.f32.mrb[0].mxu0
    %v340 = vadd.f32 0.0, %v339
    %v341 = vpop.f32.mrb[0].mxu0
    %v342 = vadd.f32 0.0, %v341
    %343 = vmatprep.mubr.f32.mxu0 0.0
    %344 = vmatmul.mubr.f32.gmra.mrb[0].mxu0 %v151
    %v345 = vpop.f32.mrb[0].mxu0
    %v346 = vadd.f32 0.0, %v345
    %v347 = vpop.f32.mrb[0].mxu0
    %v348 = vadd.f32 0.0, %v347
    %349 = vmatprep.mubr.f32.mxu0 0.0
    %350 = vmatmul.mubr.f32.gmra.mrb[0].mxu0 %v154
    %v351 = vpop.f32.mrb[0].mxu0
    %v352 = vadd.f32 0.0, %v351
    %v353 = vpop.f32.mrb[0].mxu0
    %v354 = vadd.f32 0.0, %v353
    %355 = vmatprep.mubr.f32.mxu0 0.0
    %356 = vmatmul.mubr.f32.gmra.mrb[0].mxu0 %v157
    %v357 = vpop.f32.mrb[0].mxu0
    %v358 = vadd.f32 0.0, %v357
    %v359 = vpop.f32.mrb[0].mxu0
    %v360 = vadd.f32 0.0, %v359
    %361 = vdwg.mxu0
    %362 = vmatprep.subr.mxu0 %v176
    %363 = vmatpush1.msra.mxu0 %v173
    %364 = vmatprep.subr.mxu0 0.0
    %365 = vmatpush1.msra.mxu0 0.0
    %366 = vmatprep.subr.mxu0 0.0
    %367 = vmatpush1.msra.mxu0 0.0
    %368 = vmatprep.subr.mxu0 0.0
    %369 = vmatpush1.msra.mxu0 0.0
    %370 = vmatprep.subr.mxu0 0.0
    %371 = vmatpush1.msra.mxu0 0.0
    %372 = vmatprep.subr.mxu0 0.0
    %373 = vmatpush1.msra.mxu0 0.0
    %374 = vmatprep.subr.mxu0 0.0
    %375 = vmatpush1.msra.mxu0 0.0
    %376 = vmatprep.subr.mxu0 0.0
    %377 = vmatpush1.msra.mxu0 0.0
    %378 = vmatprep.subr.mxu0 0.0
    %379 = vmatpush1.msra.mxu0 0.0
    %380 = vmatprep.subr.mxu0 0.0
    %381 = vmatpush1.msra.mxu0 0.0
    %382 = vmatprep.subr.mxu0 0.0
    %383 = vmatpush1.msra.mxu0 0.0
    %384 = vmatprep.subr.mxu0 0.0
    %385 = vmatpush1.msra.mxu0 0.0
    %386 = vmatprep.subr.mxu0 0.0
    %387 = vmatpush1.msra.mxu0 0.0
    %388 = vmatprep.subr.mxu0 0.0
    %389 = vmatpush1.msra.mxu0 0.0
    %390 = vmatprep.subr.mxu0 0.0
    %391 = vmatpush1.msra.mxu0 0.0
    %392 = vmatprep.subr.mxu0 0.0
    %393 = vmatpush1.msra.mxu0 0.0
    %394 = vmatprep.subr.mxu0 0.0
    %395 = vmatpush1.msra.mxu0 0.0
    %396 = vmatprep.subr.mxu0 0.0
    %397 = vmatpush1.msra.mxu0 0.0
    %398 = vmatprep.subr.mxu0 0.0
    %399 = vmatpush1.msra.mxu0 0.0
    %400 = vmatprep.subr.mxu0 0.0
    %401 = vmatpush1.msra.mxu0 0.0
    %402 = vmatprep.subr.mxu0 0.0
    %403 = vmatpush1.msra.mxu0 0.0
    %404 = vmatprep.subr.mxu0 0.0
    %405 = vmatpush1.msra.mxu0 0.0
    %406 = vmatprep.subr.mxu0 0.0
    %407 = vmatpush1.msra.mxu0 0.0
    %408 = vmatprep.subr.mxu0 0.0
    %409 = vmatpush1.msra.mxu0 0.0
    %410 = vmatprep.subr.mxu0 0.0
    %411 = vmatpush1.msra.mxu0 0.0
    %412 = vmatprep.subr.mxu0 0.0
    %413 = vmatpush1.msra.mxu0 0.0
    %414 = vmatprep.subr.mxu0 0.0
    %415 = vmatpush1.msra.mxu0 0.0
    %416 = vmatprep.subr.mxu0 0.0
    %417 = vmatpush1.msra.mxu0 0.0
    %418 = vmatprep.subr.mxu0 0.0
    %419 = vmatpush1.msra.mxu0 0.0
    %420 = vmatprep.subr.mxu0 0.0
    %421 = vmatpush1.msra.mxu0 0.0
    %422 = vmatprep.subr.mxu0 0.0
    %423 = vmatpush1.msra.mxu0 0.0
    %424 = vmatprep.subr.mxu0 0.0
    %425 = vmatpush1.msra.mxu0 0.0
    %426 = vmatprep.mubr.f32.mxu0 0.0
    %427 = vmatmul.mubr.f32.gmra.mrb[0].mxu0 %v148
    %v428 = vpop.f32.mrb[0].mxu0
    %v429 = vadd.f32 0.0, %v428
    %v430 = vpop.f32.mrb[0].mxu0
    %v431 = vadd.f32 0.0, %v430
    %432 = vmatprep.mubr.f32.mxu0 0.0
    %433 = vmatmul.mubr.f32.gmra.mrb[0].mxu0 %v151
    %v434 = vpop.f32.mrb[0].mxu0
    %v435 = vadd.f32 0.0, %v434
    %v436 = vpop.f32.mrb[0].mxu0
    %v437 = vadd.f32 0.0, %v436
    %438 = vmatprep.mubr.f32.mxu0 0.0
    %439 = vmatmul.mubr.f32.gmra.mrb[0].mxu0 %v154
    %v440 = vpop.f32.mrb[0].mxu0
    %v441 = vadd.f32 0.0, %v440
    %v442 = vpop.f32.mrb[0].mxu0
    %v443 = vadd.f32 0.0, %v442
    %444 = vmatprep.mubr.f32.mxu0 0.0
    %445 = vmatmul.mubr.f32.gmra.mrb[0].mxu0 %v157
    %v446 = vpop.f32.mrb[0].mxu0
    %v447 = vadd.f32 0.0, %v446
    %v448 = vpop.f32.mrb[0].mxu0
    %v449 = vadd.f32 0.0, %v448
    %450 = vdwg.mxu0
    %451 = vmatprep.subr.mxu0 %v182
    %452 = vmatpush1.msra.mxu0 %v179
    %453 = vmatprep.subr.mxu0 0.0
    %454 = vmatpush1.msra.mxu0 0.0
    %455 = vmatprep.subr.mxu0 0.0
    %456 = vmatpush1.msra.mxu0 0.0
    %457 = vmatprep.subr.mxu0 0.0
    %458 = vmatpush1.msra.mxu0 0.0
    %459 = vmatprep.subr.mxu0 0.0
    %460 = vmatpush1.msra.mxu0 0.0
    %461 = vmatprep.subr.mxu0 0.0
    %462 = vmatpush1.msra.mxu0 0.0
    %463 = vmatprep.subr.mxu0 0.0
    %464 = vmatpush1.msra.mxu0 0.0
    %465 = vmatprep.subr.mxu0 0.0
    %466 = vmatpush1.msra.mxu0 0.0
    %467 = vmatprep.subr.mxu0 0.0
    %468 = vmatpush1.msra.mxu0 0.0
    %469 = vmatprep.subr.mxu0 0.0
    %470 = vmatpush1.msra.mxu0 0.0
    %471 = vmatprep.subr.mxu0 0.0
    %472 = vmatpush1.msra.mxu0 0.0
    %473 = vmatprep.subr.mxu0 0.0
    %474 = vmatpush1.msra.mxu0 0.0
    %475 = vmatprep.subr.mxu0 0.0
    %476 = vmatpush1.msra.mxu0 0.0
    %477 = vmatprep.subr.mxu0 0.0
    %478 = vmatpush1.msra.mxu0 0.0
    %479 = vmatprep.subr.mxu0 0.0
    %480 = vmatpush1.msra.mxu0 0.0
    %481 = vmatprep.subr.mxu0 0.0
    %482 = vmatpush1.msra.mxu0 0.0
    %483 = vmatprep.subr.mxu0 0.0
    %484 = vmatpush1.msra.mxu0 0.0
    %485 = vmatprep.subr.mxu0 0.0
    %486 = vmatpush1.msra.mxu0 0.0
    %487 = vmatprep.subr.mxu0 0.0
    %488 = vmatpush1.msra.mxu0 0.0
    %489 = vmatprep.subr.mxu0 0.0
    %490 = vmatpush1.msra.mxu0 0.0
    %491 = vmatprep.subr.mxu0 0.0
    %492 = vmatpush1.msra.mxu0 0.0
    %493 = vmatprep.subr.mxu0 0.0
    %494 = vmatpush1.msra.mxu0 0.0
    %495 = vmatprep.subr.mxu0 0.0
    %496 = vmatpush1.msra.mxu0 0.0
    %497 = vmatprep.subr.mxu0 0.0
    %498 = vmatpush1.msra.mxu0 0.0
    %499 = vmatprep.subr.mxu0 0.0
    %500 = vmatpush1.msra.mxu0 0.0
    %501 = vmatprep.subr.mxu0 0.0
    %502 = vmatpush1.msra.mxu0 0.0
    %503 = vmatprep.subr.mxu0 0.0
    %504 = vmatpush1.msra.mxu0 0.0
    %505 = vmatprep.subr.mxu0 0.0
    %506 = vmatpush1.msra.mxu0 0.0
    %507 = vmatprep.subr.mxu0 0.0
    %508 = vmatpush1.msra.mxu0 0.0
    %509 = vmatprep.subr.mxu0 0.0
    %510 = vmatpush1.msra.mxu0 0.0
    %511 = vmatprep.subr.mxu0 0.0
    %512 = vmatpush1.msra.mxu0 0.0
    %513 = vmatprep.subr.mxu0 0.0
    %514 = vmatpush1.msra.mxu0 0.0
    %515 = vmatprep.mubr.f32.mxu0 0.0
    %516 = vmatmul.mubr.f32.gmra.mrb[0].mxu0 %v148
    %v517 = vpop.f32.mrb[0].mxu0
    %v518 = vadd.f32 0.0, %v517
    %v519 = vpop.f32.mrb[0].mxu0
    %v520 = vadd.f32 0.0, %v519
    %521 = vmatprep.mubr.f32.mxu0 0.0
    %522 = vmatmul.mubr.f32.gmra.mrb[0].mxu0 %v151
    %v523 = vpop.f32.mrb[0].mxu0
    %v524 = vadd.f32 0.0, %v523
    %v525 = vpop.f32.mrb[0].mxu0
    %v526 = vadd.f32 0.0, %v525
    %527 = vmatprep.mubr.f32.mxu0 0.0
    %528 = vmatmul.mubr.f32.gmra.mrb[0].mxu0 %v154
    %v529 = vpop.f32.mrb[0].mxu0
    %v530 = vadd.f32 0.0, %v529
    %v531 = vpop.f32.mrb[0].mxu0
    %v532 = vadd.f32 0.0, %v531
    %533 = vmatprep.mubr.f32.mxu0 0.0
    %534 = vmatmul.mubr.f32.gmra.mrb[0].mxu0 %v157
    %v535 = vpop.f32.mrb[0].mxu0
    %v536 = vadd.f32 0.0, %v535
    %v537 = vpop.f32.mrb[0].mxu0
    %v538 = vadd.f32 0.0, %v537
    %539 = vdwg.mxu0
    %v541 = vsel %vm146, %v137, 0
    %v544 = vsel %vm146, %v138, 0
    %v547 = vsel %vm146, %v139, 0
    %v550 = vsel %vm146, %v140, 0
    %v552 = vsel %vm159, %v50, 0
    %v554 = vsel %vm159, %v58, 0
    %v556 = vsel %vm159, %v57, 0
    %v558 = vsel %vm159, %v59, 0
    %v560 = vsel %vm159, %v67, 0
    %v562 = vsel %vm159, %v75, 0
    %v564 = vsel %vm159, %v74, 0
    %v566 = vsel %vm159, %v76, 0
    %568 = vmatprep.subr.mxu0 %v554
    %569 = vmatpush1.msra.mxu0 %v552
    %570 = vmatprep.subr.mxu0 0.0
    %571 = vmatpush1.msra.mxu0 0.0
    %572 = vmatprep.subr.mxu0 0.0
    %573 = vmatpush1.msra.mxu0 0.0
    %574 = vmatprep.subr.mxu0 0.0
    %575 = vmatpush1.msra.mxu0 0.0
    %576 = vmatprep.subr.mxu0 0.0
    %577 = vmatpush1.msra.mxu0 0.0
    %578 = vmatprep.subr.mxu0 0.0
    %579 = vmatpush1.msra.mxu0 0.0
    %580 = vmatprep.subr.mxu0 0.0
    %581 = vmatpush1.msra.mxu0 0.0
    %582 = vmatprep.subr.mxu0 0.0
    %583 = vmatpush1.msra.mxu0 0.0
    %584 = vmatprep.subr.mxu0 0.0
    %585 = vmatpush1.msra.mxu0 0.0
    %586 = vmatprep.subr.mxu0 0.0
    %587 = vmatpush1.msra.mxu0 0.0
    %588 = vmatprep.subr.mxu0 0.0
    %589 = vmatpush1.msra.mxu0 0.0
    %590 = vmatprep.subr.mxu0 0.0
    %591 = vmatpush1.msra.mxu0 0.0
    %592 = vmatprep.subr.mxu0 0.0
    %593 = vmatpush1.msra.mxu0 0.0
    %594 = vmatprep.subr.mxu0 0.0
    %595 = vmatpush1.msra.mxu0 0.0
    %596 = vmatprep.subr.mxu0 0.0
    %597 = vmatpush1.msra.mxu0 0.0
    %598 = vmatprep.subr.mxu0 0.0
    %599 = vmatpush1.msra.mxu0 0.0
    %600 = vmatprep.subr.mxu0 0.0
    %601 = vmatpush1.msra.mxu0 0.0
    %602 = vmatprep.subr.mxu0 0.0
    %603 = vmatpush1.msra.mxu0 0.0
    %604 = vmatprep.subr.mxu0 0.0
    %605 = vmatpush1.msra.mxu0 0.0
    %606 = vmatprep.subr.mxu0 0.0
    %607 = vmatpush1.msra.mxu0 0.0
    %608 = vmatprep.subr.mxu0 0.0
    %609 = vmatpush1.msra.mxu0 0.0
    %610 = vmatprep.subr.mxu0 0.0
    %611 = vmatpush1.msra.mxu0 0.0
    %612 = vmatprep.subr.mxu0 0.0
    %613 = vmatpush1.msra.mxu0 0.0
    %614 = vmatprep.subr.mxu0 0.0
    %615 = vmatpush1.msra.mxu0 0.0
    %616 = vmatprep.subr.mxu0 0.0
    %617 = vmatpush1.msra.mxu0 0.0
    %618 = vmatprep.subr.mxu0 0.0
    %619 = vmatpush1.msra.mxu0 0.0
    %620 = vmatprep.subr.mxu0 0.0
    %621 = vmatpush1.msra.mxu0 0.0
    %622 = vmatprep.subr.mxu0 0.0
    %623 = vmatpush1.msra.mxu0 0.0
    %624 = vmatprep.subr.mxu0 0.0
    %625 = vmatpush1.msra.mxu0 0.0
    %626 = vmatprep.subr.mxu0 0.0
    %627 = vmatpush1.msra.mxu0 0.0
    %628 = vmatprep.subr.mxu0 0.0
    %629 = vmatpush1.msra.mxu0 0.0
    %630 = vmatprep.subr.mxu0 0.0
    %631 = vmatpush1.msra.mxu0 0.0
    %632 = vmatprep.mubr.f32.mxu0 0.0
    %633 = vmatmul.mubr.f32.gmra.mrb[0].mxu0 %v541
    %v634 = vpop.f32.mrb[0].mxu0
    %v635 = vadd.f32 %v251, %v634
    %v636 = vpop.f32.mrb[0].mxu0
    %v637 = vadd.f32 %v253, %v636
    %638 = vmatprep.mubr.f32.mxu0 0.0
    %639 = vmatmul.mubr.f32.gmra.mrb[0].mxu0 %v544
    %v640 = vpop.f32.mrb[0].mxu0
    %v641 = vadd.f32 %v257, %v640
    %v642 = vpop.f32.mrb[0].mxu0
    %v643 = vadd.f32 %v259, %v642
    %644 = vmatprep.mubr.f32.mxu0 0.0
    %645 = vmatmul.mubr.f32.gmra.mrb[0].mxu0 %v547
    %v646 = vpop.f32.mrb[0].mxu0
    %v647 = vadd.f32 %v263, %v646
    %v648 = vpop.f32.mrb[0].mxu0
    %v649 = vadd.f32 %v265, %v648
    %650 = vmatprep.mubr.f32.mxu0 0.0
    %651 = vmatmul.mubr.f32.gmra.mrb[0].mxu0 %v550
    %v652 = vpop.f32.mrb[0].mxu0
    %v653 = vadd.f32 %v269, %v652
    %v654 = vpop.f32.mrb[0].mxu0
    %v655 = vadd.f32 %v271, %v654
    %656 = vdwg.mxu0
    %657 = vmatprep.subr.mxu0 %v558
    %658 = vmatpush1.msra.mxu0 %v556
    %659 = vmatprep.subr.mxu0 0.0
    %660 = vmatpush1.msra.mxu0 0.0
    %661 = vmatprep.subr.mxu0 0.0
    %662 = vmatpush1.msra.mxu0 0.0
    %663 = vmatprep.subr.mxu0 0.0
    %664 = vmatpush1.msra.mxu0 0.0
    %665 = vmatprep.subr.mxu0 0.0
    %666 = vmatpush1.msra.mxu0 0.0
    %667 = vmatprep.subr.mxu0 0.0
    %668 = vmatpush1.msra.mxu0 0.0
    %669 = vmatprep.subr.mxu0 0.0
    %670 = vmatpush1.msra.mxu0 0.0
    %671 = vmatprep.subr.mxu0 0.0
    %672 = vmatpush1.msra.mxu0 0.0
    %673 = vmatprep.subr.mxu0 0.0
    %674 = vmatpush1.msra.mxu0 0.0
    %675 = vmatprep.subr.mxu0 0.0
    %676 = vmatpush1.msra.mxu0 0.0
    %677 = vmatprep.subr.mxu0 0.0
    %678 = vmatpush1.msra.mxu0 0.0
    %679 = vmatprep.subr.mxu0 0.0
    %680 = vmatpush1.msra.mxu0 0.0
    %681 = vmatprep.subr.mxu0 0.0
    %682 = vmatpush1.msra.mxu0 0.0
    %683 = vmatprep.subr.mxu0 0.0
    %684 = vmatpush1.msra.mxu0 0.0
    %685 = vmatprep.subr.mxu0 0.0
    %686 = vmatpush1.msra.mxu0 0.0
    %687 = vmatprep.subr.mxu0 0.0
    %688 = vmatpush1.msra.mxu0 0.0
    %689 = vmatprep.subr.mxu0 0.0
    %690 = vmatpush1.msra.mxu0 0.0
    %691 = vmatprep.subr.mxu0 0.0
    %692 = vmatpush1.msra.mxu0 0.0
    %693 = vmatprep.subr.mxu0 0.0
    %694 = vmatpush1.msra.mxu0 0.0
    %695 = vmatprep.subr.mxu0 0.0
    %696 = vmatpush1.msra.mxu0 0.0
    %697 = vmatprep.subr.mxu0 0.0
    %698 = vmatpush1.msra.mxu0 0.0
    %699 = vmatprep.subr.mxu0 0.0
    %700 = vmatpush1.msra.mxu0 0.0
    %701 = vmatprep.subr.mxu0 0.0
    %702 = vmatpush1.msra.mxu0 0.0
    %703 = vmatprep.subr.mxu0 0.0
    %704 = vmatpush1.msra.mxu0 0.0
    %705 = vmatprep.subr.mxu0 0.0
    %706 = vmatpush1.msra.mxu0 0.0
    %707 = vmatprep.subr.mxu0 0.0
    %708 = vmatpush1.msra.mxu0 0.0
    %709 = vmatprep.subr.mxu0 0.0
    %710 = vmatpush1.msra.mxu0 0.0
    %711 = vmatprep.subr.mxu0 0.0
    %712 = vmatpush1.msra.mxu0 0.0
    %713 = vmatprep.subr.mxu0 0.0
    %714 = vmatpush1.msra.mxu0 0.0
    %715 = vmatprep.subr.mxu0 0.0
    %716 = vmatpush1.msra.mxu0 0.0
    %717 = vmatprep.subr.mxu0 0.0
    %718 = vmatpush1.msra.mxu0 0.0
    %719 = vmatprep.subr.mxu0 0.0
    %720 = vmatpush1.msra.mxu0 0.0
    %721 = vmatprep.mubr.f32.mxu0 0.0
    %722 = vmatmul.mubr.f32.gmra.mrb[0].mxu0 %v541
    %v723 = vpop.f32.mrb[0].mxu0
    %v724 = vadd.f32 %v340, %v723
    %v725 = vpop.f32.mrb[0].mxu0
    %v726 = vadd.f32 %v342, %v725
    %727 = vmatprep.mubr.f32.mxu0 0.0
    %728 = vmatmul.mubr.f32.gmra.mrb[0].mxu0 %v544
    %v729 = vpop.f32.mrb[0].mxu0
    %v730 = vadd.f32 %v346, %v729
    %v731 = vpop.f32.mrb[0].mxu0
    %v732 = vadd.f32 %v348, %v731
    %733 = vmatprep.mubr.f32.mxu0 0.0
    %734 = vmatmul.mubr.f32.gmra.mrb[0].mxu0 %v547
    %v735 = vpop.f32.mrb[0].mxu0
    %v736 = vadd.f32 %v352, %v735
    %v737 = vpop.f32.mrb[0].mxu0
    %v738 = vadd.f32 %v354, %v737
    %739 = vmatprep.mubr.f32.mxu0 0.0
    %740 = vmatmul.mubr.f32.gmra.mrb[0].mxu0 %v550
    %v741 = vpop.f32.mrb[0].mxu0
    %v742 = vadd.f32 %v358, %v741
    %v743 = vpop.f32.mrb[0].mxu0
    %v744 = vadd.f32 %v360, %v743
    %745 = vdwg.mxu0
    %746 = vmatprep.subr.mxu0 %v562
    %747 = vmatpush1.msra.mxu0 %v560
    %748 = vmatprep.subr.mxu0 0.0
    %749 = vmatpush1.msra.mxu0 0.0
    %750 = vmatprep.subr.mxu0 0.0
    %751 = vmatpush1.msra.mxu0 0.0
    %752 = vmatprep.subr.mxu0 0.0
    %753 = vmatpush1.msra.mxu0 0.0
    %754 = vmatprep.subr.mxu0 0.0
    %755 = vmatpush1.msra.mxu0 0.0
    %756 = vmatprep.subr.mxu0 0.0
    %757 = vmatpush1.msra.mxu0 0.0
    %758 = vmatprep.subr.mxu0 0.0
    %759 = vmatpush1.msra.mxu0 0.0
    %760 = vmatprep.subr.mxu0 0.0
    %761 = vmatpush1.msra.mxu0 0.0
    %762 = vmatprep.subr.mxu0 0.0
    %763 = vmatpush1.msra.mxu0 0.0
    %764 = vmatprep.subr.mxu0 0.0
    %765 = vmatpush1.msra.mxu0 0.0
    %766 = vmatprep.subr.mxu0 0.0
    %767 = vmatpush1.msra.mxu0 0.0
    %768 = vmatprep.subr.mxu0 0.0
    %769 = vmatpush1.msra.mxu0 0.0
    %770 = vmatprep.subr.mxu0 0.0
    %771 = vmatpush1.msra.mxu0 0.0
    %772 = vmatprep.subr.mxu0 0.0
    %773 = vmatpush1.msra.mxu0 0.0
    %774 = vmatprep.subr.mxu0 0.0
    %775 = vmatpush1.msra.mxu0 0.0
    %776 = vmatprep.subr.mxu0 0.0
    %777 = vmatpush1.msra.mxu0 0.0
    %778 = vmatprep.subr.mxu0 0.0
    %779 = vmatpush1.msra.mxu0 0.0
    %780 = vmatprep.subr.mxu0 0.0
    %781 = vmatpush1.msra.mxu0 0.0
    %782 = vmatprep.subr.mxu0 0.0
    %783 = vmatpush1.msra.mxu0 0.0
    %784 = vmatprep.subr.mxu0 0.0
    %785 = vmatpush1.msra.mxu0 0.0
    %786 = vmatprep.subr.mxu0 0.0
    %787 = vmatpush1.msra.mxu0 0.0
    %788 = vmatprep.subr.mxu0 0.0
    %789 = vmatpush1.msra.mxu0 0.0
    %790 = vmatprep.subr.mxu0 0.0
    %791 = vmatpush1.msra.mxu0 0.0
    %792 = vmatprep.subr.mxu0 0.0
    %793 = vmatpush1.msra.mxu0 0.0
    %794 = vmatprep.subr.mxu0 0.0
    %795 = vmatpush1.msra.mxu0 0.0
    %796 = vmatprep.subr.mxu0 0.0
    %797 = vmatpush1.msra.mxu0 0.0
    %798 = vmatprep.subr.mxu0 0.0
    %799 = vmatpush1.msra.mxu0 0.0
    %800 = vmatprep.subr.mxu0 0.0
    %801 = vmatpush1.msra.mxu0 0.0
    %802 = vmatprep.subr.mxu0 0.0
    %803 = vmatpush1.msra.mxu0 0.0
    %804 = vmatprep.subr.mxu0 0.0
    %805 = vmatpush1.msra.mxu0 0.0
    %806 = vmatprep.subr.mxu0 0.0
    %807 = vmatpush1.msra.mxu0 0.0
    %808 = vmatprep.subr.mxu0 0.0
    %809 = vmatpush1.msra.mxu0 0.0
    %810 = vmatprep.mubr.f32.mxu0 0.0
    %811 = vmatmul.mubr.f32.gmra.mrb[0].mxu0 %v541
    %v812 = vpop.f32.mrb[0].mxu0
    %v813 = vadd.f32 %v429, %v812
    %v814 = vpop.f32.mrb[0].mxu0
    %v815 = vadd.f32 %v431, %v814
    %816 = vmatprep.mubr.f32.mxu0 0.0
    %817 = vmatmul.mubr.f32.gmra.mrb[0].mxu0 %v544
    %v818 = vpop.f32.mrb[0].mxu0
    %v819 = vadd.f32 %v435, %v818
    %v820 = vpop.f32.mrb[0].mxu0
    %v821 = vadd.f32 %v437, %v820
    %822 = vmatprep.mubr.f32.mxu0 0.0
    %823 = vmatmul.mubr.f32.gmra.mrb[0].mxu0 %v547
    %v824 = vpop.f32.mrb[0].mxu0
    %v825 = vadd.f32 %v441, %v824
    %v826 = vpop.f32.mrb[0].mxu0
    %v827 = vadd.f32 %v443, %v826
    %828 = vmatprep.mubr.f32.mxu0 0.0
    %829 = vmatmul.mubr.f32.gmra.mrb[0].mxu0 %v550
    %v830 = vpop.f32.mrb[0].mxu0
    %v831 = vadd.f32 %v447, %v830
    %v832 = vpop.f32.mrb[0].mxu0
    %v833 = vadd.f32 %v449, %v832
    %834 = vdwg.mxu0
    %835 = vmatprep.subr.mxu0 %v566
    %836 = vmatpush1.msra.mxu0 %v564
    %837 = vmatprep.subr.mxu0 0.0
    %838 = vmatpush1.msra.mxu0 0.0
    %839 = vmatprep.subr.mxu0 0.0
    %840 = vmatpush1.msra.mxu0 0.0
    %841 = vmatprep.subr.mxu0 0.0
    %842 = vmatpush1.msra.mxu0 0.0
    %843 = vmatprep.subr.mxu0 0.0
    %844 = vmatpush1.msra.mxu0 0.0
    %845 = vmatprep.subr.mxu0 0.0
    %846 = vmatpush1.msra.mxu0 0.0
    %847 = vmatprep.subr.mxu0 0.0
    %848 = vmatpush1.msra.mxu0 0.0
    %849 = vmatprep.subr.mxu0 0.0
    %850 = vmatpush1.msra.mxu0 0.0
    %851 = vmatprep.subr.mxu0 0.0
    %852 = vmatpush1.msra.mxu0 0.0
    %853 = vmatprep.subr.mxu0 0.0
    %854 = vmatpush1.msra.mxu0 0.0
    %855 = vmatprep.subr.mxu0 0.0
    %856 = vmatpush1.msra.mxu0 0.0
    %857 = vmatprep.subr.mxu0 0.0
    %858 = vmatpush1.msra.mxu0 0.0
    %859 = vmatprep.subr.mxu0 0.0
    %860 = vmatpush1.msra.mxu0 0.0
    %861 = vmatprep.subr.mxu0 0.0
    %862 = vmatpush1.msra.mxu0 0.0
    %863 = vmatprep.subr.mxu0 0.0
    %864 = vmatpush1.msra.mxu0 0.0
    %865 = vmatprep.subr.mxu0 0.0
    %866 = vmatpush1.msra.mxu0 0.0
    %867 = vmatprep.subr.mxu0 0.0
    %868 = vmatpush1.msra.mxu0 0.0
    %869 = vmatprep.subr.mxu0 0.0
    %870 = vmatpush1.msra.mxu0 0.0
    %871 = vmatprep.subr.mxu0 0.0
    %872 = vmatpush1.msra.mxu0 0.0
    %873 = vmatprep.subr.mxu0 0.0
    %874 = vmatpush1.msra.mxu0 0.0
    %875 = vmatprep.subr.mxu0 0.0
    %876 = vmatpush1.msra.mxu0 0.0
    %877 = vmatprep.subr.mxu0 0.0
    %878 = vmatpush1.msra.mxu0 0.0
    %879 = vmatprep.subr.mxu0 0.0
    %880 = vmatpush1.msra.mxu0 0.0
    %881 = vmatprep.subr.mxu0 0.0
    %882 = vmatpush1.msra.mxu0 0.0
    %883 = vmatprep.subr.mxu0 0.0
    %884 = vmatpush1.msra.mxu0 0.0
    %885 = vmatprep.subr.mxu0 0.0
    %886 = vmatpush1.msra.mxu0 0.0
    %887 = vmatprep.subr.mxu0 0.0
    %888 = vmatpush1.msra.mxu0 0.0
    %889 = vmatprep.subr.mxu0 0.0
    %890 = vmatpush1.msra.mxu0 0.0
    %891 = vmatprep.subr.mxu0 0.0
    %892 = vmatpush1.msra.mxu0 0.0
    %893 = vmatprep.subr.mxu0 0.0
    %894 = vmatpush1.msra.mxu0 0.0
    %895 = vmatprep.subr.mxu0 0.0
    %896 = vmatpush1.msra.mxu0 0.0
    %897 = vmatprep.subr.mxu0 0.0
    %898 = vmatpush1.msra.mxu0 0.0
    %899 = vmatprep.mubr.f32.mxu0 0.0
    %900 = vmatmul.mubr.f32.gmra.mrb[0].mxu0 %v541
    %v901 = vpop.f32.mrb[0].mxu0
    %v902 = vadd.f32 %v518, %v901
    %v903 = vpop.f32.mrb[0].mxu0
    %v904 = vadd.f32 %v520, %v903
    %905 = vmatprep.mubr.f32.mxu0 0.0
    %906 = vmatmul.mubr.f32.gmra.mrb[0].mxu0 %v544
    %v907 = vpop.f32.mrb[0].mxu0
    %v908 = vadd.f32 %v524, %v907
    %v909 = vpop.f32.mrb[0].mxu0
    %v910 = vadd.f32 %v526, %v909
    %911 = vmatprep.mubr.f32.mxu0 0.0
    %912 = vmatmul.mubr.f32.gmra.mrb[0].mxu0 %v547
    %v913 = vpop.f32.mrb[0].mxu0
    %v914 = vadd.f32 %v530, %v913
    %v915 = vpop.f32.mrb[0].mxu0
    %v916 = vadd.f32 %v532, %v915
    %917 = vmatprep.mubr.f32.mxu0 0.0
    %918 = vmatmul.mubr.f32.gmra.mrb[0].mxu0 %v550
    %v919 = vpop.f32.mrb[0].mxu0
    %v920 = vadd.f32 %v536, %v919
    %v921 = vpop.f32.mrb[0].mxu0
    %v922 = vadd.f32 %v538, %v921
    %923 = vdwg.mxu0
    %s924 = scalar_lea.vmem %s2, 64
    %v925 = vld [vmem:[%s924] sm:$0xff]
    %v926 = vld [vmem:[%s924 + $0x8] sm:$0xff]
    %v927 = vld [vmem:[%s924 + $0x10] sm:$0xff]
    %v928 = vld [vmem:[%s924 + $0x18] sm:$0xff]
    %v930 = vsel %vm146, %v925, 0
    %v933 = vsel %vm146, %v926, 0
    %v936 = vsel %vm146, %v927, 0
    %v939 = vsel %vm146, %v928, 0
    %v942 = vsel %vm159, %v135, 0
    %v945 = vsel %vm159, %v134, 0
    %v948 = vsel %vm159, %v133, 0
    %v951 = vsel %vm159, %v132, 0
    %v954 = vsel %vm159, %v131, 0
    %v957 = vsel %vm159, %v130, 0
    %v960 = vsel %vm159, %v129, 0
    %v963 = vsel %vm159, %v136, 0
    %965 = vmatprep.subr.mxu0 %v945
    %966 = vmatpush1.msra.mxu0 %v942
    %967 = vmatprep.subr.mxu0 0.0
    %968 = vmatpush1.msra.mxu0 0.0
    %969 = vmatprep.subr.mxu0 0.0
    %970 = vmatpush1.msra.mxu0 0.0
    %971 = vmatprep.subr.mxu0 0.0
    %972 = vmatpush1.msra.mxu0 0.0
    %973 = vmatprep.subr.mxu0 0.0
    %974 = vmatpush1.msra.mxu0 0.0
    %975 = vmatprep.subr.mxu0 0.0
    %976 = vmatpush1.msra.mxu0 0.0
    %977 = vmatprep.subr.mxu0 0.0
    %978 = vmatpush1.msra.mxu0 0.0
    %979 = vmatprep.subr.mxu0 0.0
    %980 = vmatpush1.msra.mxu0 0.0
    %981 = vmatprep.subr.mxu0 0.0
    %982 = vmatpush1.msra.mxu0 0.0
    %983 = vmatprep.subr.mxu0 0.0
    %984 = vmatpush1.msra.mxu0 0.0
    %985 = vmatprep.subr.mxu0 0.0
    %986 = vmatpush1.msra.mxu0 0.0
    %987 = vmatprep.subr.mxu0 0.0
    %988 = vmatpush1.msra.mxu0 0.0
    %989 = vmatprep.subr.mxu0 0.0
    %990 = vmatpush1.msra.mxu0 0.0
    %991 = vmatprep.subr.mxu0 0.0
    %992 = vmatpush1.msra.mxu0 0.0
    %993 = vmatprep.subr.mxu0 0.0
    %994 = vmatpush1.msra.mxu0 0.0
    %995 = vmatprep.subr.mxu0 0.0
    %996 = vmatpush1.msra.mxu0 0.0
    %997 = vmatprep.subr.mxu0 0.0
    %998 = vmatpush1.msra.mxu0 0.0
    %999 = vmatprep.subr.mxu0 0.0
    %1000 = vmatpush1.msra.mxu0 0.0
    %1001 = vmatprep.subr.mxu0 0.0
    %1002 = vmatpush1.msra.mxu0 0.0
    %1003 = vmatprep.subr.mxu0 0.0
    %1004 = vmatpush1.msra.mxu0 0.0
    %1005 = vmatprep.subr.mxu0 0.0
    %1006 = vmatpush1.msra.mxu0 0.0
    %1007 = vmatprep.subr.mxu0 0.0
    %1008 = vmatpush1.msra.mxu0 0.0
    %1009 = vmatprep.subr.mxu0 0.0
    %1010 = vmatpush1.msra.mxu0 0.0
    %1011 = vmatprep.subr.mxu0 0.0
    %1012 = vmatpush1.msra.mxu0 0.0
    %1013 = vmatprep.subr.mxu0 0.0
    %1014 = vmatpush1.msra.mxu0 0.0
    %1015 = vmatprep.subr.mxu0 0.0
    %1016 = vmatpush1.msra.mxu0 0.0
    %1017 = vmatprep.subr.mxu0 0.0
    %1018 = vmatpush1.msra.mxu0 0.0
    %1019 = vmatprep.subr.mxu0 0.0
    %1020 = vmatpush1.msra.mxu0 0.0
    %1021 = vmatprep.subr.mxu0 0.0
    %1022 = vmatpush1.msra.mxu0 0.0
    %1023 = vmatprep.subr.mxu0 0.0
    %1024 = vmatpush1.msra.mxu0 0.0
    %1025 = vmatprep.subr.mxu0 0.0
    %1026 = vmatpush1.msra.mxu0 0.0
    %1027 = vmatprep.subr.mxu0 0.0
    %1028 = vmatpush1.msra.mxu0 0.0
    %1029 = vmatprep.mubr.f32.mxu0 0.0
    %1030 = vmatmul.mubr.f32.gmra.mrb[0].mxu0 %v930
    %v1031 = vpop.f32.mrb[0].mxu0
    %v1032 = vadd.f32 0.0, %v1031
    %v1033 = vpop.f32.mrb[0].mxu0
    %v1034 = vadd.f32 0.0, %v1033
    %1035 = vmatprep.mubr.f32.mxu0 0.0
    %1036 = vmatmul.mubr.f32.gmra.mrb[0].mxu0 %v933
    %v1037 = vpop.f32.mrb[0].mxu0
    %v1038 = vadd.f32 0.0, %v1037
    %v1039 = vpop.f32.mrb[0].mxu0
    %v1040 = vadd.f32 0.0, %v1039
    %1041 = vmatprep.mubr.f32.mxu0 0.0
    %1042 = vmatmul.mubr.f32.gmra.mrb[0].mxu0 %v936
    %v1043 = vpop.f32.mrb[0].mxu0
    %v1044 = vadd.f32 0.0, %v1043
    %v1045 = vpop.f32.mrb[0].mxu0
    %v1046 = vadd.f32 0.0, %v1045
    %1047 = vmatprep.mubr.f32.mxu0 0.0
    %1048 = vmatmul.mubr.f32.gmra.mrb[0].mxu0 %v939
    %v1049 = vpop.f32.mrb[0].mxu0
    %v1050 = vadd.f32 0.0, %v1049
    %v1051 = vpop.f32.mrb[0].mxu0
    %v1052 = vadd.f32 0.0, %v1051
    %1053 = vdwg.mxu0
    %1054 = vmatprep.subr.mxu0 %v951
    %1055 = vmatpush1.msra.mxu0 %v948
    %1056 = vmatprep.subr.mxu0 0.0
    %1057 = vmatpush1.msra.mxu0 0.0
    %1058 = vmatprep.subr.mxu0 0.0
    %1059 = vmatpush1.msra.mxu0 0.0
    %1060 = vmatprep.subr.mxu0 0.0
    %1061 = vmatpush1.msra.mxu0 0.0
    %1062 = vmatprep.subr.mxu0 0.0
    %1063 = vmatpush1.msra.mxu0 0.0
    %1064 = vmatprep.subr.mxu0 0.0
    %1065 = vmatpush1.msra.mxu0 0.0
    %1066 = vmatprep.subr.mxu0 0.0
    %1067 = vmatpush1.msra.mxu0 0.0
    %1068 = vmatprep.subr.mxu0 0.0
    %1069 = vmatpush1.msra.mxu0 0.0
    %1070 = vmatprep.subr.mxu0 0.0
    %1071 = vmatpush1.msra.mxu0 0.0
    %1072 = vmatprep.subr.mxu0 0.0
    %1073 = vmatpush1.msra.mxu0 0.0
    %1074 = vmatprep.subr.mxu0 0.0
    %1075 = vmatpush1.msra.mxu0 0.0
    %1076 = vmatprep.subr.mxu0 0.0
    %1077 = vmatpush1.msra.mxu0 0.0
    %1078 = vmatprep.subr.mxu0 0.0
    %1079 = vmatpush1.msra.mxu0 0.0
    %1080 = vmatprep.subr.mxu0 0.0
    %1081 = vmatpush1.msra.mxu0 0.0
    %1082 = vmatprep.subr.mxu0 0.0
    %1083 = vmatpush1.msra.mxu0 0.0
    %1084 = vmatprep.subr.mxu0 0.0
    %1085 = vmatpush1.msra.mxu0 0.0
    %1086 = vmatprep.subr.mxu0 0.0
    %1087 = vmatpush1.msra.mxu0 0.0
    %1088 = vmatprep.subr.mxu0 0.0
    %1089 = vmatpush1.msra.mxu0 0.0
    %1090 = vmatprep.subr.mxu0 0.0
    %1091 = vmatpush1.msra.mxu0 0.0
    %1092 = vmatprep.subr.mxu0 0.0
    %1093 = vmatpush1.msra.mxu0 0.0
    %1094 = vmatprep.subr.mxu0 0.0
    %1095 = vmatpush1.msra.mxu0 0.0
    %1096 = vmatprep.subr.mxu0 0.0
    %1097 = vmatpush1.msra.mxu0 0.0
    %1098 = vmatprep.subr.mxu0 0.0
    %1099 = vmatpush1.msra.mxu0 0.0
    %1100 = vmatprep.subr.mxu0 0.0
    %1101 = vmatpush1.msra.mxu0 0.0
    %1102 = vmatprep.subr.mxu0 0.0
    %1103 = vmatpush1.msra.mxu0 0.0
    %1104 = vmatprep.subr.mxu0 0.0
    %1105 = vmatpush1.msra.mxu0 0.0
    %1106 = vmatprep.subr.mxu0 0.0
    %1107 = vmatpush1.msra.mxu0 0.0
    %1108 = vmatprep.subr.mxu0 0.0
    %1109 = vmatpush1.msra.mxu0 0.0
    %1110 = vmatprep.subr.mxu0 0.0
    %1111 = vmatpush1.msra.mxu0 0.0
    %1112 = vmatprep.subr.mxu0 0.0
    %1113 = vmatpush1.msra.mxu0 0.0
    %1114 = vmatprep.subr.mxu0 0.0
    %1115 = vmatpush1.msra.mxu0 0.0
    %1116 = vmatprep.subr.mxu0 0.0
    %1117 = vmatpush1.msra.mxu0 0.0
    %1118 = vmatprep.mubr.f32.mxu0 0.0
    %1119 = vmatmul.mubr.f32.gmra.mrb[0].mxu0 %v930
    %v1120 = vpop.f32.mrb[0].mxu0
    %v1121 = vadd.f32 0.0, %v1120
    %v1122 = vpop.f32.mrb[0].mxu0
    %v1123 = vadd.f32 0.0, %v1122
    %1124 = vmatprep.mubr.f32.mxu0 0.0
    %1125 = vmatmul.mubr.f32.gmra.mrb[0].mxu0 %v933
    %v1126 = vpop.f32.mrb[0].mxu0
    %v1127 = vadd.f32 0.0, %v1126
    %v1128 = vpop.f32.mrb[0].mxu0
    %v1129 = vadd.f32 0.0, %v1128
    %1130 = vmatprep.mubr.f32.mxu0 0.0
    %1131 = vmatmul.mubr.f32.gmra.mrb[0].mxu0 %v936
    %v1132 = vpop.f32.mrb[0].mxu0
    %v1133 = vadd.f32 0.0, %v1132
    %v1134 = vpop.f32.mrb[0].mxu0
    %v1135 = vadd.f32 0.0, %v1134
    %1136 = vmatprep.mubr.f32.mxu0 0.0
    %1137 = vmatmul.mubr.f32.gmra.mrb[0].mxu0 %v939
    %v1138 = vpop.f32.mrb[0].mxu0
    %v1139 = vadd.f32 0.0, %v1138
    %v1140 = vpop.f32.mrb[0].mxu0
    %v1141 = vadd.f32 0.0, %v1140
    %1142 = vdwg.mxu0
    %1143 = vmatprep.subr.mxu0 %v957
    %1144 = vmatpush1.msra.mxu0 %v954
    %1145 = vmatprep.subr.mxu0 0.0
    %1146 = vmatpush1.msra.mxu0 0.0
    %1147 = vmatprep.subr.mxu0 0.0
    %1148 = vmatpush1.msra.mxu0 0.0
    %1149 = vmatprep.subr.mxu0 0.0
    %1150 = vmatpush1.msra.mxu0 0.0
    %1151 = vmatprep.subr.mxu0 0.0
    %1152 = vmatpush1.msra.mxu0 0.0
    %1153 = vmatprep.subr.mxu0 0.0
    %1154 = vmatpush1.msra.mxu0 0.0
    %1155 = vmatprep.subr.mxu0 0.0
    %1156 = vmatpush1.msra.mxu0 0.0
    %1157 = vmatprep.subr.mxu0 0.0
    %1158 = vmatpush1.msra.mxu0 0.0
    %1159 = vmatprep.subr.mxu0 0.0
    %1160 = vmatpush1.msra.mxu0 0.0
    %1161 = vmatprep.subr.mxu0 0.0
    %1162 = vmatpush1.msra.mxu0 0.0
    %1163 = vmatprep.subr.mxu0 0.0
    %1164 = vmatpush1.msra.mxu0 0.0
    %1165 = vmatprep.subr.mxu0 0.0
    %1166 = vmatpush1.msra.mxu0 0.0
    %1167 = vmatprep.subr.mxu0 0.0
    %1168 = vmatpush1.msra.mxu0 0.0
    %1169 = vmatprep.subr.mxu0 0.0
    %1170 = vmatpush1.msra.mxu0 0.0
    %1171 = vmatprep.subr.mxu0 0.0
    %1172 = vmatpush1.msra.mxu0 0.0
    %1173 = vmatprep.subr.mxu0 0.0
    %1174 = vmatpush1.msra.mxu0 0.0
    %1175 = vmatprep.subr.mxu0 0.0
    %1176 = vmatpush1.msra.mxu0 0.0
    %1177 = vmatprep.subr.mxu0 0.0
    %1178 = vmatpush1.msra.mxu0 0.0
    %1179 = vmatprep.subr.mxu0 0.0
    %1180 = vmatpush1.msra.mxu0 0.0
    %1181 = vmatprep.subr.mxu0 0.0
    %1182 = vmatpush1.msra.mxu0 0.0
    %1183 = vmatprep.subr.mxu0 0.0
    %1184 = vmatpush1.msra.mxu0 0.0
    %1185 = vmatprep.subr.mxu0 0.0
    %1186 = vmatpush1.msra.mxu0 0.0
    %1187 = vmatprep.subr.mxu0 0.0
    %1188 = vmatpush1.msra.mxu0 0.0
    %1189 = vmatprep.subr.mxu0 0.0
    %1190 = vmatpush1.msra.mxu0 0.0
    %1191 = vmatprep.subr.mxu0 0.0
    %1192 = vmatpush1.msra.mxu0 0.0
    %1193 = vmatprep.subr.mxu0 0.0
    %1194 = vmatpush1.msra.mxu0 0.0
    %1195 = vmatprep.subr.mxu0 0.0
    %1196 = vmatpush1.msra.mxu0 0.0
    %1197 = vmatprep.subr.mxu0 0.0
    %1198 = vmatpush1.msra.mxu0 0.0
    %1199 = vmatprep.subr.mxu0 0.0
    %1200 = vmatpush1.msra.mxu0 0.0
    %1201 = vmatprep.subr.mxu0 0.0
    %1202 = vmatpush1.msra.mxu0 0.0
    %1203 = vmatprep.subr.mxu0 0.0
    %1204 = vmatpush1.msra.mxu0 0.0
    %1205 = vmatprep.subr.mxu0 0.0
    %1206 = vmatpush1.msra.mxu0 0.0
    %1207 = vmatprep.mubr.f32.mxu0 0.0
    %1208 = vmatmul.mubr.f32.gmra.mrb[0].mxu0 %v930
    %v1209 = vpop.f32.mrb[0].mxu0
    %v1210 = vadd.f32 0.0, %v1209
    %v1211 = vpop.f32.mrb[0].mxu0
    %v1212 = vadd.f32 0.0, %v1211
    %1213 = vmatprep.mubr.f32.mxu0 0.0
    %1214 = vmatmul.mubr.f32.gmra.mrb[0].mxu0 %v933
    %v1215 = vpop.f32.mrb[0].mxu0
    %v1216 = vadd.f32 0.0, %v1215
    %v1217 = vpop.f32.mrb[0].mxu0
    %v1218 = vadd.f32 0.0, %v1217
    %1219 = vmatprep.mubr.f32.mxu0 0.0
    %1220 = vmatmul.mubr.f32.gmra.mrb[0].mxu0 %v936
    %v1221 = vpop.f32.mrb[0].mxu0
    %v1222 = vadd.f32 0.0, %v1221
    %v1223 = vpop.f32.mrb[0].mxu0
    %v1224 = vadd.f32 0.0, %v1223
    %1225 = vmatprep.mubr.f32.mxu0 0.0
    %1226 = vmatmul.mubr.f32.gmra.mrb[0].mxu0 %v939
    %v1227 = vpop.f32.mrb[0].mxu0
    %v1228 = vadd.f32 0.0, %v1227
    %v1229 = vpop.f32.mrb[0].mxu0
    %v1230 = vadd.f32 0.0, %v1229
    %1231 = vdwg.mxu0
    %1232 = vmatprep.subr.mxu0 %v963
    %1233 = vmatpush1.msra.mxu0 %v960
    %1234 = vmatprep.subr.mxu0 0.0
    %1235 = vmatpush1.msra.mxu0 0.0
    %1236 = vmatprep.subr.mxu0 0.0
    %1237 = vmatpush1.msra.mxu0 0.0
    %1238 = vmatprep.subr.mxu0 0.0
    %1239 = vmatpush1.msra.mxu0 0.0
    %1240 = vmatprep.subr.mxu0 0.0
    %1241 = vmatpush1.msra.mxu0 0.0
    %1242 = vmatprep.subr.mxu0 0.0
    %1243 = vmatpush1.msra.mxu0 0.0
    %1244 = vmatprep.subr.mxu0 0.0
    %1245 = vmatpush1.msra.mxu0 0.0
    %1246 = vmatprep.subr.mxu0 0.0
    %1247 = vmatpush1.msra.mxu0 0.0
    %1248 = vmatprep.subr.mxu0 0.0
    %1249 = vmatpush1.msra.mxu0 0.0
    %1250 = vmatprep.subr.mxu0 0.0
    %1251 = vmatpush1.msra.mxu0 0.0
    %1252 = vmatprep.subr.mxu0 0.0
    %1253 = vmatpush1.msra.mxu0 0.0
    %1254 = vmatprep.subr.mxu0 0.0
    %1255 = vmatpush1.msra.mxu0 0.0
    %1256 = vmatprep.subr.mxu0 0.0
    %1257 = vmatpush1.msra.mxu0 0.0
    %1258 = vmatprep.subr.mxu0 0.0
    %1259 = vmatpush1.msra.mxu0 0.0
    %1260 = vmatprep.subr.mxu0 0.0
    %1261 = vmatpush1.msra.mxu0 0.0
    %1262 = vmatprep.subr.mxu0 0.0
    %1263 = vmatpush1.msra.mxu0 0.0
    %1264 = vmatprep.subr.mxu0 0.0
    %1265 = vmatpush1.msra.mxu0 0.0
    %1266 = vmatprep.subr.mxu0 0.0
    %1267 = vmatpush1.msra.mxu0 0.0
    %1268 = vmatprep.subr.mxu0 0.0
    %1269 = vmatpush1.msra.mxu0 0.0
    %1270 = vmatprep.subr.mxu0 0.0
    %1271 = vmatpush1.msra.mxu0 0.0
    %1272 = vmatprep.subr.mxu0 0.0
    %1273 = vmatpush1.msra.mxu0 0.0
    %1274 = vmatprep.subr.mxu0 0.0
    %1275 = vmatpush1.msra.mxu0 0.0
    %1276 = vmatprep.subr.mxu0 0.0
    %1277 = vmatpush1.msra.mxu0 0.0
    %1278 = vmatprep.subr.mxu0 0.0
    %1279 = vmatpush1.msra.mxu0 0.0
    %1280 = vmatprep.subr.mxu0 0.0
    %1281 = vmatpush1.msra.mxu0 0.0
    %1282 = vmatprep.subr.mxu0 0.0
    %1283 = vmatpush1.msra.mxu0 0.0
    %1284 = vmatprep.subr.mxu0 0.0
    %1285 = vmatpush1.msra.mxu0 0.0
    %1286 = vmatprep.subr.mxu0 0.0
    %1287 = vmatpush1.msra.mxu0 0.0
    %1288 = vmatprep.subr.mxu0 0.0
    %1289 = vmatpush1.msra.mxu0 0.0
    %1290 = vmatprep.subr.mxu0 0.0
    %1291 = vmatpush1.msra.mxu0 0.0
    %1292 = vmatprep.subr.mxu0 0.0
    %1293 = vmatpush1.msra.mxu0 0.0
    %1294 = vmatprep.subr.mxu0 0.0
    %1295 = vmatpush1.msra.mxu0 0.0
    %1296 = vmatprep.mubr.f32.mxu0 0.0
    %1297 = vmatmul.mubr.f32.gmra.mrb[0].mxu0 %v930
    %v1298 = vpop.f32.mrb[0].mxu0
    %v1299 = vadd.f32 0.0, %v1298
    %v1300 = vpop.f32.mrb[0].mxu0
    %v1301 = vadd.f32 0.0, %v1300
    %1302 = vmatprep.mubr.f32.mxu0 0.0
    %1303 = vmatmul.mubr.f32.gmra.mrb[0].mxu0 %v933
    %v1304 = vpop.f32.mrb[0].mxu0
    %v1305 = vadd.f32 0.0, %v1304
    %v1306 = vpop.f32.mrb[0].mxu0
    %v1307 = vadd.f32 0.0, %v1306
    %1308 = vmatprep.mubr.f32.mxu0 0.0
    %1309 = vmatmul.mubr.f32.gmra.mrb[0].mxu0 %v936
    %v1310 = vpop.f32.mrb[0].mxu0
    %v1311 = vadd.f32 0.0, %v1310
    %v1312 = vpop.f32.mrb[0].mxu0
    %v1313 = vadd.f32 0.0, %v1312
    %1314 = vmatprep.mubr.f32.mxu0 0.0
    %1315 = vmatmul.mubr.f32.gmra.mrb[0].mxu0 %v939
    %v1316 = vpop.f32.mrb[0].mxu0
    %v1317 = vadd.f32 0.0, %v1316
    %v1318 = vpop.f32.mrb[0].mxu0
    %v1319 = vadd.f32 0.0, %v1318
    %1320 = vdwg.mxu0
    %v1321 = vadd.f32 %v635, %v1032
    %v1322 = vadd.f32 %v637, %v1034
    %v1323 = vadd.f32 %v724, %v1121
    %v1324 = vadd.f32 %v726, %v1123
    %v1325 = vadd.f32 %v813, %v1210
    %v1326 = vadd.f32 %v815, %v1212
    %v1327 = vadd.f32 %v902, %v1299
    %v1328 = vadd.f32 %v904, %v1301
    %v1329 = vadd.f32 %v641, %v1038
    %v1330 = vadd.f32 %v643, %v1040
    %v1331 = vadd.f32 %v730, %v1127
    %v1332 = vadd.f32 %v732, %v1129
    %v1333 = vadd.f32 %v819, %v1216
    %v1334 = vadd.f32 %v821, %v1218
    %v1335 = vadd.f32 %v908, %v1305
    %v1336 = vadd.f32 %v910, %v1307
    %v1337 = vadd.f32 %v647, %v1044
    %v1338 = vadd.f32 %v649, %v1046
    %v1339 = vadd.f32 %v736, %v1133
    %v1340 = vadd.f32 %v738, %v1135
    %v1341 = vadd.f32 %v825, %v1222
    %v1342 = vadd.f32 %v827, %v1224
    %v1343 = vadd.f32 %v914, %v1311
    %v1344 = vadd.f32 %v916, %v1313
    %v1345 = vadd.f32 %v653, %v1050
    %v1346 = vadd.f32 %v655, %v1052
    %v1347 = vadd.f32 %v742, %v1139
    %v1348 = vadd.f32 %v744, %v1141
    %v1349 = vadd.f32 %v831, %v1228
    %v1350 = vadd.f32 %v833, %v1230
    %v1351 = vadd.f32 %v920, %v1317
    %v1352 = vadd.f32 %v922, %v1319
    %v1353 = vadd.s32 %v102, 128
    %v1354 = vadd.s32 %v102, 256
    %v1355 = vadd.s32 %v102, 384
    %v1356 = vadd.s32 %v102, 512
    %v1357 = vadd.s32 %v102, 640
    %v1358 = vadd.s32 %v102, 768
    %v1359 = vadd.s32 %v102, 896
    %vm1360 = vcmp.lt.s32.totalorder %v102, 0
    %v1361 = vsub.s32 0, %v102
    %v1362 = vsel %vm1360, %v1361, %v102
    %v1363 = vshrl.u32 %v1362, 7
    %v1364 = vand.u32 %v1362, 127
    %v1365 = vsub.s32 0, %v1364
    %v1366 = vsel %vm1360, %v1365, %v1364
    %vm1367 = vcmp.lt.s32.totalorder %v1353, 0
    %v1368 = vsub.s32 0, %v1353
    %v1369 = vsel %vm1367, %v1368, %v1353
    %v1370 = vshrl.u32 %v1369, 7
    %v1371 = vand.u32 %v1369, 127
    %v1372 = vsub.s32 0, %v1371
    %v1373 = vsel %vm1367, %v1372, %v1371
    %vm1374 = vcmp.lt.s32.totalorder %v1354, 0
    %v1375 = vsub.s32 0, %v1354
    %v1376 = vsel %vm1374, %v1375, %v1354
    %v1377 = vshrl.u32 %v1376, 7
    %v1378 = vand.u32 %v1376, 127
    %v1379 = vsub.s32 0, %v1378
    %v1380 = vsel %vm1374, %v1379, %v1378
    %vm1381 = vcmp.lt.s32.totalorder %v1355, 0
    %v1382 = vsub.s32 0, %v1355
    %v1383 = vsel %vm1381, %v1382, %v1355
    %v1384 = vshrl.u32 %v1383, 7
    %v1385 = vand.u32 %v1383, 127
    %v1386 = vsub.s32 0, %v1385
    %v1387 = vsel %vm1381, %v1386, %v1385
    %vm1388 = vcmp.lt.s32.totalorder %v1356, 0
    %v1389 = vsub.s32 0, %v1356
    %v1390 = vsel %vm1388, %v1389, %v1356
    %v1391 = vshrl.u32 %v1390, 7
    %v1392 = vand.u32 %v1390, 127
    %v1393 = vsub.s32 0, %v1392
    %v1394 = vsel %vm1388, %v1393, %v1392
    %vm1395 = vcmp.lt.s32.totalorder %v1357, 0
    %v1396 = vsub.s32 0, %v1357
    %v1397 = vsel %vm1395, %v1396, %v1357
    %v1398 = vshrl.u32 %v1397, 7
    %v1399 = vand.u32 %v1397, 127
    %v1400 = vsub.s32 0, %v1399
    %v1401 = vsel %vm1395, %v1400, %v1399
    %vm1402 = vcmp.lt.s32.totalorder %v1358, 0
    %v1403 = vsub.s32 0, %v1358
    %v1404 = vsel %vm1402, %v1403, %v1358
    %v1405 = vshrl.u32 %v1404, 7
    %v1406 = vand.u32 %v1404, 127
    %v1407 = vsub.s32 0, %v1406
    %v1408 = vsel %vm1402, %v1407, %v1406
    %vm1409 = vcmp.lt.s32.totalorder %v1359, 0
    %v1410 = vsub.s32 0, %v1359
    %v1411 = vsel %vm1409, %v1410, %v1359
    %v1412 = vshrl.u32 %v1411, 7
    %v1413 = vand.u32 %v1411, 127
    %v1414 = vsub.s32 0, %v1413
    %v1415 = vsel %vm1409, %v1414, %v1413
    %vm1416 = vcmp.ne.s32.totalorder %v1366, 0
    %vm1417 = vcmp.ne.s32.totalorder %v1373, 0
    %vm1418 = vcmp.ne.s32.totalorder %v1380, 0
    %vm1419 = vcmp.ne.s32.totalorder %v1387, 0
    %vm1420 = vcmp.ne.s32.totalorder %v1394, 0
    %vm1421 = vcmp.ne.s32.totalorder %v1401, 0
    %vm1422 = vcmp.ne.s32.totalorder %v1408, 0
    %vm1423 = vcmp.ne.s32.totalorder %v1415, 0
    %vm1424 = vcmp.lt.s32.totalorder %v1366, 0
    %vm1425 = vcmp.lt.s32.totalorder %v1373, 0
    %vm1426 = vcmp.lt.s32.totalorder %v1380, 0
    %vm1427 = vcmp.lt.s32.totalorder %v1387, 0
    %vm1428 = vcmp.lt.s32.totalorder %v1394, 0
    %vm1429 = vcmp.lt.s32.totalorder %v1401, 0
    %vm1430 = vcmp.lt.s32.totalorder %v1408, 0
    %vm1431 = vcmp.lt.s32.totalorder %v1415, 0
    %vm1432 = vmand %vm1424, %vm1416
    %vm1433 = vmand %vm1425, %vm1417
    %vm1434 = vmand %vm1426, %vm1418
    %vm1435 = vmand %vm1427, %vm1419
    %vm1436 = vmand %vm1428, %vm1420
    %vm1437 = vmand %vm1429, %vm1421
    %vm1438 = vmand %vm1430, %vm1422
    %vm1439 = vmand %vm1431, %vm1423
    %v1440 = vadd.s32 %v1366, 128
    %v1441 = vadd.s32 %v1373, 128
    %v1442 = vadd.s32 %v1380, 128
    %v1443 = vadd.s32 %v1387, 128
    %v1444 = vadd.s32 %v1394, 128
    %v1445 = vadd.s32 %v1401, 128
    %v1446 = vadd.s32 %v1408, 128
    %v1447 = vadd.s32 %v1415, 128
    %v1448 = vsel %vm1432, %v1440, %v1366
    %v1449 = vsel %vm1433, %v1441, %v1373
    %v1450 = vsel %vm1434, %v1442, %v1380
    %v1451 = vsel %vm1435, %v1443, %v1387
    %v1452 = vsel %vm1436, %v1444, %v1394
    %v1453 = vsel %vm1437, %v1445, %v1401
    %v1454 = vsel %vm1438, %v1446, %v1408
    %v1455 = vsel %vm1439, %v1447, %v1415
    %vm1456 = vcmp.lt.s32.totalorder %v1448, 126
    %vm1457 = vcmp.lt.s32.totalorder %v1449, 126
    %vm1458 = vcmp.lt.s32.totalorder %v1450, 126
    %vm1459 = vcmp.lt.s32.totalorder %v1451, 126
    %vm1460 = vcmp.lt.s32.totalorder %v1452, 126
    %vm1461 = vcmp.lt.s32.totalorder %v1453, 126
    %vm1462 = vcmp.lt.s32.totalorder %v1454, 126
    %vm1463 = vcmp.lt.s32.totalorder %v1455, 126
    %v1464 = vsel %vm1456, 1, 0
    %v1465 = vsel %vm1457, 1, 0
    %v1466 = vsel %vm1458, 1, 0
    %v1467 = vsel %vm1459, 1, 0
    %v1468 = vsel %vm1460, 1, 0
    %v1469 = vsel %vm1461, 1, 0
    %v1470 = vsel %vm1462, 1, 0
    %v1471 = vsel %vm1463, 1, 0
    %v1472 = vcvt.s32.f32 %v1464
    %v1473 = vcvt.s32.f32 %v1465
    %v1474 = vcvt.s32.f32 %v1466
    %v1475 = vcvt.s32.f32 %v1467
    %v1476 = vcvt.s32.f32 %v1468
    %v1477 = vcvt.s32.f32 %v1469
    %v1478 = vcvt.s32.f32 %v1470
    %v1479 = vcvt.s32.f32 %v1471
    %v1480 = vld [vmem:[%s3] sm:$0xff]
    %v1481 = vld [vmem:[%s3 + $0x8] sm:$0xff]
    %v1482 = vld [vmem:[%s3 + $0x10] sm:$0xff]
    %v1483 = vld [vmem:[%s3 + $0x18] sm:$0xff]
    %1485 = vset.pattern.permute.xlu0 0
    %1486 = vperm.xlu0 %1485, %v1480
    %v1487 = vpop.permute.xlu0 %1486
    %1490 = vset.pattern.permute.xlu0 0
    %1491 = vperm.xlu0 %1490, %v1481
    %v1492 = vpop.permute.xlu0 %1491
    %1495 = vset.pattern.permute.xlu0 0
    %1496 = vperm.xlu0 %1495, %v1482
    %v1497 = vpop.permute.xlu0 %1496
    %1500 = vset.pattern.permute.xlu0 0
    %1501 = vperm.xlu0 %1500, %v1483
    %v1502 = vpop.permute.xlu0 %1501
    %v1504 = vadd.f32 %v1321, %v1487
    %v1505 = vadd.f32 %v1322, %v1487
    %v1506 = vadd.f32 %v1323, %v1487
    %v1507 = vadd.f32 %v1324, %v1487
    %v1508 = vadd.f32 %v1325, %v1487
    %v1509 = vadd.f32 %v1326, %v1487
    %v1510 = vadd.f32 %v1327, %v1487
    %v1511 = vadd.f32 %v1328, %v1487
    %v1512 = vadd.f32 %v1329, %v1492
    %v1513 = vadd.f32 %v1330, %v1492
    %v1514 = vadd.f32 %v1331, %v1492
    %v1515 = vadd.f32 %v1332, %v1492
    %v1516 = vadd.f32 %v1333, %v1492
    %v1517 = vadd.f32 %v1334, %v1492
    %v1518 = vadd.f32 %v1335, %v1492
    %v1519 = vadd.f32 %v1336, %v1492
    %v1520 = vadd.f32 %v1337, %v1497
    %v1521 = vadd.f32 %v1338, %v1497
    %v1522 = vadd.f32 %v1339, %v1497
    %v1523 = vadd.f32 %v1340, %v1497
    %v1524 = vadd.f32 %v1341, %v1497
    %v1525 = vadd.f32 %v1342, %v1497
    %v1526 = vadd.f32 %v1343, %v1497
    %v1527 = vadd.f32 %v1344, %v1497
    %v1528 = vadd.f32 %v1345, %v1502
    %v1529 = vadd.f32 %v1346, %v1502
    %v1530 = vadd.f32 %v1347, %v1502
    %v1531 = vadd.f32 %v1348, %v1502
    %v1532 = vadd.f32 %v1349, %v1502
    %v1533 = vadd.f32 %v1350, %v1502
    %v1534 = vadd.f32 %v1351, %v1502
    %v1535 = vadd.f32 %v1352, %v1502
    %v1536 = vmax.f32 %v1504, 0.0
    %v1537 = vmax.f32 %v1505, 0.0
    %v1538 = vmax.f32 %v1506, 0.0
    %v1539 = vmax.f32 %v1507, 0.0
    %v1540 = vmax.f32 %v1508, 0.0
    %v1541 = vmax.f32 %v1509, 0.0
    %v1542 = vmax.f32 %v1510, 0.0
    %v1543 = vmax.f32 %v1511, 0.0
    %v1544 = vmax.f32 %v1512, 0.0
    %v1545 = vmax.f32 %v1513, 0.0
    %v1546 = vmax.f32 %v1514, 0.0
    %v1547 = vmax.f32 %v1515, 0.0
    %v1548 = vmax.f32 %v1516, 0.0
    %v1549 = vmax.f32 %v1517, 0.0
    %v1550 = vmax.f32 %v1518, 0.0
    %v1551 = vmax.f32 %v1519, 0.0
    %v1552 = vmax.f32 %v1520, 0.0
    %v1553 = vmax.f32 %v1521, 0.0
    %v1554 = vmax.f32 %v1522, 0.0
    %v1555 = vmax.f32 %v1523, 0.0
    %v1556 = vmax.f32 %v1524, 0.0
    %v1557 = vmax.f32 %v1525, 0.0
    %v1558 = vmax.f32 %v1526, 0.0
    %v1559 = vmax.f32 %v1527, 0.0
    %v1560 = vmax.f32 %v1528, 0.0
    %v1561 = vmax.f32 %v1529, 0.0
    %v1562 = vmax.f32 %v1530, 0.0
    %v1563 = vmax.f32 %v1531, 0.0
    %v1564 = vmax.f32 %v1532, 0.0
    %v1565 = vmax.f32 %v1533, 0.0
    %v1566 = vmax.f32 %v1534, 0.0
    %v1567 = vmax.f32 %v1535, 0.0
    %v1568 = vmul.f32 %v1536, %v1472
    %v1569 = vmul.f32 %v1537, %v1473
    %v1570 = vmul.f32 %v1538, %v1474
    %v1571 = vmul.f32 %v1539, %v1475
    %v1572 = vmul.f32 %v1540, %v1476
    %v1573 = vmul.f32 %v1541, %v1477
    %v1574 = vmul.f32 %v1542, %v1478
    %v1575 = vmul.f32 %v1543, %v1479
    %v1576 = vmul.f32 %v1544, %v1472
    %v1577 = vmul.f32 %v1545, %v1473
    %v1578 = vmul.f32 %v1546, %v1474
    %v1579 = vmul.f32 %v1547, %v1475
    %v1580 = vmul.f32 %v1548, %v1476
    %v1581 = vmul.f32 %v1549, %v1477
    %v1582 = vmul.f32 %v1550, %v1478
    %v1583 = vmul.f32 %v1551, %v1479
    %v1584 = vmul.f32 %v1552, %v1472
    %v1585 = vmul.f32 %v1553, %v1473
    %v1586 = vmul.f32 %v1554, %v1474
    %v1587 = vmul.f32 %v1555, %v1475
    %v1588 = vmul.f32 %v1556, %v1476
    %v1589 = vmul.f32 %v1557, %v1477
    %v1590 = vmul.f32 %v1558, %v1478
    %v1591 = vmul.f32 %v1559, %v1479
    %v1592 = vmul.f32 %v1560, %v1472
    %v1593 = vmul.f32 %v1561, %v1473
    %v1594 = vmul.f32 %v1562, %v1474
    %v1595 = vmul.f32 %v1563, %v1475
    %v1596 = vmul.f32 %v1564, %v1476
    %v1597 = vmul.f32 %v1565, %v1477
    %v1598 = vmul.f32 %v1566, %v1478
    %v1599 = vmul.f32 %v1567, %v1479
    %1600 = vrot.lane.b32.xlu0 %v1568, 1
    %v1601 = vpop.permute.xlu0 %1600
    %1602 = vrot.lane.b32.xlu0 %v1576, 1
    %v1603 = vpop.permute.xlu0 %1602
    %1604 = vrot.lane.b32.xlu0 %v1584, 1
    %v1605 = vpop.permute.xlu0 %1604
    %1606 = vrot.lane.b32.xlu0 %v1592, 1
    %v1607 = vpop.permute.xlu0 %1606
    %1608 = vrot.lane.b32.xlu0 %v1569, 1
    %v1609 = vpop.permute.xlu0 %1608
    %1610 = vrot.lane.b32.xlu0 %v1577, 1
    %v1611 = vpop.permute.xlu0 %1610
    %1612 = vrot.lane.b32.xlu0 %v1585, 1
    %v1613 = vpop.permute.xlu0 %1612
    %1614 = vrot.lane.b32.xlu0 %v1593, 1
    %v1615 = vpop.permute.xlu0 %1614
    %1616 = vrot.lane.b32.xlu0 %v1570, 1
    %v1617 = vpop.permute.xlu0 %1616
    %1618 = vrot.lane.b32.xlu0 %v1578, 1
    %v1619 = vpop.permute.xlu0 %1618
    %1620 = vrot.lane.b32.xlu0 %v1586, 1
    %v1621 = vpop.permute.xlu0 %1620
    %1622 = vrot.lane.b32.xlu0 %v1594, 1
    %v1623 = vpop.permute.xlu0 %1622
    %1624 = vrot.lane.b32.xlu0 %v1571, 1
    %v1625 = vpop.permute.xlu0 %1624
    %1626 = vrot.lane.b32.xlu0 %v1579, 1
    %v1627 = vpop.permute.xlu0 %1626
    %1628 = vrot.lane.b32.xlu0 %v1587, 1
    %v1629 = vpop.permute.xlu0 %1628
    %1630 = vrot.lane.b32.xlu0 %v1595, 1
    %v1631 = vpop.permute.xlu0 %1630
    %1632 = vrot.lane.b32.xlu0 %v1572, 1
    %v1633 = vpop.permute.xlu0 %1632
    %1634 = vrot.lane.b32.xlu0 %v1580, 1
    %v1635 = vpop.permute.xlu0 %1634
    %1636 = vrot.lane.b32.xlu0 %v1588, 1
    %v1637 = vpop.permute.xlu0 %1636
    %1638 = vrot.lane.b32.xlu0 %v1596, 1
    %v1639 = vpop.permute.xlu0 %1638
    %1640 = vrot.lane.b32.xlu0 %v1573, 1
    %v1641 = vpop.permute.xlu0 %1640
    %1642 = vrot.lane.b32.xlu0 %v1581, 1
    %v1643 = vpop.permute.xlu0 %1642
    %1644 = vrot.lane.b32.xlu0 %v1589, 1
    %v1645 = vpop.permute.xlu0 %1644
    %1646 = vrot.lane.b32.xlu0 %v1597, 1
    %v1647 = vpop.permute.xlu0 %1646
    %1648 = vrot.lane.b32.xlu0 %v1574, 1
    %v1649 = vpop.permute.xlu0 %1648
    %1650 = vrot.lane.b32.xlu0 %v1582, 1
    %v1651 = vpop.permute.xlu0 %1650
    %1652 = vrot.lane.b32.xlu0 %v1590, 1
    %v1653 = vpop.permute.xlu0 %1652
    %1654 = vrot.lane.b32.xlu0 %v1598, 1
    %v1655 = vpop.permute.xlu0 %1654
    %1656 = vrot.lane.b32.xlu0 %v1575, 1
    %v1657 = vpop.permute.xlu0 %1656
    %1658 = vrot.lane.b32.xlu0 %v1583, 1
    %v1659 = vpop.permute.xlu0 %1658
    %1660 = vrot.lane.b32.xlu0 %v1591, 1
    %v1661 = vpop.permute.xlu0 %1660
    %1662 = vrot.lane.b32.xlu0 %v1599, 1
    %v1663 = vpop.permute.xlu0 %1662
    %vm1664 = vcmp.lt.s32.totalorder %v102, 1
    %v1665 = vsel %vm1664, %v1649, %v1657
    %v1666 = vsel %vm1664, %v1651, %v1659
    %v1667 = vsel %vm1664, %v1653, %v1661
    %v1668 = vsel %vm1664, %v1655, %v1663
    %v1669 = vsel %vm1664, %v1641, %v1649
    %v1670 = vsel %vm1664, %v1643, %v1651
    %v1671 = vsel %vm1664, %v1645, %v1653
    %v1672 = vsel %vm1664, %v1647, %v1655
    %v1673 = vsel %vm1664, %v1633, %v1641
    %v1674 = vsel %vm1664, %v1635, %v1643
    %v1675 = vsel %vm1664, %v1637, %v1645
    %v1676 = vsel %vm1664, %v1639, %v1647
    %v1677 = vsel %vm1664, %v1625, %v1633
    %v1678 = vsel %vm1664, %v1627, %v1635
    %v1679 = vsel %vm1664, %v1629, %v1637
    %v1680 = vsel %vm1664, %v1631, %v1639
    %v1681 = vsel %vm1664, %v1617, %v1625
    %v1682 = vsel %vm1664, %v1619, %v1627
    %v1683 = vsel %vm1664, %v1621, %v1629
    %v1684 = vsel %vm1664, %v1623, %v1631
    %v1685 = vsel %vm1664, %v1609, %v1617
    %v1686 = vsel %vm1664, %v1611, %v1619
    %v1687 = vsel %vm1664, %v1613, %v1621
    %v1688 = vsel %vm1664, %v1615, %v1623
    %v1689 = vsel %vm1664, %v1601, %v1609
    %v1690 = vsel %vm1664, %v1603, %v1611
    %v1691 = vsel %vm1664, %v1605, %v1613
    %v1692 = vsel %vm1664, %v1607, %v1615
    %v1693 = vsel %vm1664, %v1657, %v1601
    %v1694 = vsel %vm1664, %v1659, %v1603
    %v1695 = vsel %vm1664, %v1661, %v1605
    %v1696 = vsel %vm1664, %v1663, %v1607
    %1697 = vrot.lane.b32.xlu0 %v1568, 2
    %v1698 = vpop.permute.xlu0 %1697
    %1699 = vrot.lane.b32.xlu0 %v1576, 2
    %v1700 = vpop.permute.xlu0 %1699
    %1701 = vrot.lane.b32.xlu0 %v1584, 2
    %v1702 = vpop.permute.xlu0 %1701
    %1703 = vrot.lane.b32.xlu0 %v1592, 2
    %v1704 = vpop.permute.xlu0 %1703
    %1705 = vrot.lane.b32.xlu0 %v1569, 2
    %v1706 = vpop.permute.xlu0 %1705
    %1707 = vrot.lane.b32.xlu0 %v1577, 2
    %v1708 = vpop.permute.xlu0 %1707
    %1709 = vrot.lane.b32.xlu0 %v1585, 2
    %v1710 = vpop.permute.xlu0 %1709
    %1711 = vrot.lane.b32.xlu0 %v1593, 2
    %v1712 = vpop.permute.xlu0 %1711
    %1713 = vrot.lane.b32.xlu0 %v1570, 2
    %v1714 = vpop.permute.xlu0 %1713
    %1715 = vrot.lane.b32.xlu0 %v1578, 2
    %v1716 = vpop.permute.xlu0 %1715
    %1717 = vrot.lane.b32.xlu0 %v1586, 2
    %v1718 = vpop.permute.xlu0 %1717
    %1719 = vrot.lane.b32.xlu0 %v1594, 2
    %v1720 = vpop.permute.xlu0 %1719
    %1721 = vrot.lane.b32.xlu0 %v1571, 2
    %v1722 = vpop.permute.xlu0 %1721
    %1723 = vrot.lane.b32.xlu0 %v1579, 2
    %v1724 = vpop.permute.xlu0 %1723
    %1725 = vrot.lane.b32.xlu0 %v1587, 2
    %v1726 = vpop.permute.xlu0 %1725
    %1727 = vrot.lane.b32.xlu0 %v1595, 2
    %v1728 = vpop.permute.xlu0 %1727
    %1729 = vrot.lane.b32.xlu0 %v1572, 2
    %v1730 = vpop.permute.xlu0 %1729
    %1731 = vrot.lane.b32.xlu0 %v1580, 2
    %v1732 = vpop.permute.xlu0 %1731
    %1733 = vrot.lane.b32.xlu0 %v1588, 2
    %v1734 = vpop.permute.xlu0 %1733
    %1735 = vrot.lane.b32.xlu0 %v1596, 2
    %v1736 = vpop.permute.xlu0 %1735
    %1737 = vrot.lane.b32.xlu0 %v1573, 2
    %v1738 = vpop.permute.xlu0 %1737
    %1739 = vrot.lane.b32.xlu0 %v1581, 2
    %v1740 = vpop.permute.xlu0 %1739
    %1741 = vrot.lane.b32.xlu0 %v1589, 2
    %v1742 = vpop.permute.xlu0 %1741
    %1743 = vrot.lane.b32.xlu0 %v1597, 2
    %v1744 = vpop.permute.xlu0 %1743
    %1745 = vrot.lane.b32.xlu0 %v1574, 2
    %v1746 = vpop.permute.xlu0 %1745
    %1747 = vrot.lane.b32.xlu0 %v1582, 2
    %v1748 = vpop.permute.xlu0 %1747
    %1749 = vrot.lane.b32.xlu0 %v1590, 2
    %v1750 = vpop.permute.xlu0 %1749
    %1751 = vrot.lane.b32.xlu0 %v1598, 2
    %v1752 = vpop.permute.xlu0 %1751
    %1753 = vrot.lane.b32.xlu0 %v1575, 2
    %v1754 = vpop.permute.xlu0 %1753
    %1755 = vrot.lane.b32.xlu0 %v1583, 2
    %v1756 = vpop.permute.xlu0 %1755
    %1757 = vrot.lane.b32.xlu0 %v1591, 2
    %v1758 = vpop.permute.xlu0 %1757
    %1759 = vrot.lane.b32.xlu0 %v1599, 2
    %v1760 = vpop.permute.xlu0 %1759
    %vm1761 = vcmp.lt.s32.totalorder %v102, 2
    %v1762 = vsel %vm1761, %v1746, %v1754
    %v1763 = vsel %vm1761, %v1748, %v1756
    %v1764 = vsel %vm1761, %v1750, %v1758
    %v1765 = vsel %vm1761, %v1752, %v1760
    %v1766 = vsel %vm1761, %v1738, %v1746
    %v1767 = vsel %vm1761, %v1740, %v1748
    %v1768 = vsel %vm1761, %v1742, %v1750
    %v1769 = vsel %vm1761, %v1744, %v1752
    %v1770 = vsel %vm1761, %v1730, %v1738
    %v1771 = vsel %vm1761, %v1732, %v1740
    %v1772 = vsel %vm1761, %v1734, %v1742
    %v1773 = vsel %vm1761, %v1736, %v1744
    %v1774 = vsel %vm1761, %v1722, %v1730
    %v1775 = vsel %vm1761, %v1724, %v1732
    %v1776 = vsel %vm1761, %v1726, %v1734
    %v1777 = vsel %vm1761, %v1728, %v1736
    %v1778 = vsel %vm1761, %v1714, %v1722
    %v1779 = vsel %vm1761, %v1716, %v1724
    %v1780 = vsel %vm1761, %v1718, %v1726
    %v1781 = vsel %vm1761, %v1720, %v1728
    %v1782 = vsel %vm1761, %v1706, %v1714
    %v1783 = vsel %vm1761, %v1708, %v1716
    %v1784 = vsel %vm1761, %v1710, %v1718
    %v1785 = vsel %vm1761, %v1712, %v1720
    %v1786 = vsel %vm1761, %v1698, %v1706
    %v1787 = vsel %vm1761, %v1700, %v1708
    %v1788 = vsel %vm1761, %v1702, %v1710
    %v1789 = vsel %vm1761, %v1704, %v1712
    %v1790 = vsel %vm1761, %v1754, %v1698
    %v1791 = vsel %vm1761, %v1756, %v1700
    %v1792 = vsel %vm1761, %v1758, %v1702
    %v1793 = vsel %vm1761, %v1760, %v1704
    %v1794 = vpack.c.bf16 %v1791, %v1790
    %v1795 = vpack.c.bf16 %v1787, %v1786
    %v1796 = vpack.c.bf16 %v1783, %v1782
    %v1797 = vpack.c.bf16 %v1779, %v1778
    %v1798 = vpack.c.bf16 %v1775, %v1774
    %v1799 = vpack.c.bf16 %v1771, %v1770
    %v1800 = vpack.c.bf16 %v1767, %v1766
    %v1801 = vpack.c.bf16 %v1763, %v1762
    %v1802 = vpack.c.bf16 %v1793, %v1792
    %v1803 = vpack.c.bf16 %v1789, %v1788
    %v1804 = vpack.c.bf16 %v1785, %v1784
    %v1805 = vpack.c.bf16 %v1781, %v1780
    %v1806 = vpack.c.bf16 %v1777, %v1776
    %v1807 = vpack.c.bf16 %v1773, %v1772
    %v1808 = vpack.c.bf16 %v1769, %v1768
    %v1809 = vpack.c.bf16 %v1765, %v1764
    %v1810 = vpack.c.bf16 %v1694, %v1693
    %v1811 = vpack.c.bf16 %v1690, %v1689
    %v1812 = vpack.c.bf16 %v1686, %v1685
    %v1813 = vpack.c.bf16 %v1682, %v1681
    %v1814 = vpack.c.bf16 %v1678, %v1677
    %v1815 = vpack.c.bf16 %v1674, %v1673
    %v1816 = vpack.c.bf16 %v1670, %v1669
    %v1817 = vpack.c.bf16 %v1666, %v1665
    %v1818 = vpack.c.bf16 %v1696, %v1695
    %v1819 = vpack.c.bf16 %v1692, %v1691
    %v1820 = vpack.c.bf16 %v1688, %v1687
    %v1821 = vpack.c.bf16 %v1684, %v1683
    %v1822 = vpack.c.bf16 %v1680, %v1679
    %v1823 = vpack.c.bf16 %v1676, %v1675
    %v1824 = vpack.c.bf16 %v1672, %v1671
    %v1825 = vpack.c.bf16 %v1668, %v1667
    %v1826 = vpack.c.bf16 %v1576, %v1568
    %v1827 = vpack.c.bf16 %v1577, %v1569
    %v1828 = vpack.c.bf16 %v1578, %v1570
    %v1829 = vpack.c.bf16 %v1579, %v1571
    %v1830 = vpack.c.bf16 %v1580, %v1572
    %v1831 = vpack.c.bf16 %v1581, %v1573
    %v1832 = vpack.c.bf16 %v1582, %v1574
    %v1833 = vpack.c.bf16 %v1583, %v1575
    %v1834 = vpack.c.bf16 %v1592, %v1584
    %v1835 = vpack.c.bf16 %v1593, %v1585
    %v1836 = vpack.c.bf16 %v1594, %v1586
    %v1837 = vpack.c.bf16 %v1595, %v1587
    %v1838 = vpack.c.bf16 %v1596, %v1588
    %v1839 = vpack.c.bf16 %v1597, %v1589
    %v1840 = vpack.c.bf16 %v1598, %v1590
    %v1841 = vpack.c.bf16 %v1599, %v1591
    %v1842 = vld [vmem:[%s4] sm:$0xf]
    %v1843 = vld [vmem:[%s4 + $0x4] sm:$0xf]
    %v1844 = vld [vmem:[%s4 + $0x8] sm:$0xf]
    %v1845 = vld [vmem:[%s4 + $0xc] sm:$0xf]
    %v1846 = vld [vmem:[%s5] sm:$0xff]
    %v1847 = vld [vmem:[%s5 + $0x8] sm:$0xff]
    %v1848 = vld [vmem:[%s5 + $0x10] sm:$0xff]
    %v1849 = vld [vmem:[%s5 + $0x18] sm:$0xff]
    %1851 = vset.pattern.permute.xlu0 0
    %1852 = vperm.xlu0 %1851, %v1846
    %v1853 = vpop.permute.xlu0 %1852
    %1856 = vset.pattern.permute.xlu0 0
    %1857 = vperm.xlu0 %1856, %v1847
    %v1858 = vpop.permute.xlu0 %1857
    %1861 = vset.pattern.permute.xlu0 0
    %1862 = vperm.xlu0 %1861, %v1848
    %v1863 = vpop.permute.xlu0 %1862
    %1866 = vset.pattern.permute.xlu0 0
    %1867 = vperm.xlu0 %1866, %v1849
    %v1868 = vpop.permute.xlu0 %1867
    %v1874 = vunpack.c.l.b16 %v1842
    %v1875 = vunpack.c.l.b16 %v1843
    %v1876 = vunpack.c.l.b16 %v1844
    %v1877 = vunpack.c.l.b16 %v1845
    %v1878 = vpack.c.b16 %v1875, %v1874
    %v1879 = vpack.c.b16 %v1877, %v1876
    %vm1880 = vcmask 785408
    %v1882 = vsel %vm1880, %v1878, 0
    %v1885 = vsel %vm1880, %v1879, 0
    %1887 = vmatprep.subr.bf16.mxu0 %v1795
    %1888 = vmatpush1.bf16.msra.mxu0 %v1794
    %1889 = vmatprep.subr.bf16.mxu0 %v1803
    %1890 = vmatpush1.bf16.msra.mxu0 %v1802
    %1891 = vmatprep.subr.bf16.mxu0 %v1811
    %1892 = vmatpush1.bf16.msra.mxu0 %v1810
    %1893 = vmatprep.subr.bf16.mxu0 %v1819
    %1894 = vmatpush1.bf16.msra.mxu0 %v1818
    %1895 = vmatprep.subr.bf16.mxu0 %v1827
    %1896 = vmatpush1.bf16.msra.mxu0 %v1826
    %1897 = vmatprep.subr.bf16.mxu0 %v1835
    %1898 = vmatpush1.bf16.msra.mxu0 %v1834
    %1899 = vmatprep.subr.bf16.mxu0 0
    %1900 = vmatpush1.bf16.msra.mxu0 0
    %1901 = vmatprep.subr.bf16.mxu0 0
    %1902 = vmatpush1.bf16.msra.mxu0 0
    %1903 = vmatprep.subr.bf16.mxu0 0
    %1904 = vmatpush1.bf16.msra.mxu0 0
    %1905 = vmatprep.subr.bf16.mxu0 0
    %1906 = vmatpush1.bf16.msra.mxu0 0
    %1907 = vmatprep.subr.bf16.mxu0 0
    %1908 = vmatpush1.bf16.msra.mxu0 0
    %1909 = vmatprep.subr.bf16.mxu0 0
    %1910 = vmatpush1.bf16.msra.mxu0 0
    %1911 = vmatprep.subr.bf16.mxu0 0
    %1912 = vmatpush1.bf16.msra.mxu0 0
    %1913 = vmatprep.subr.bf16.mxu0 0
    %1914 = vmatpush1.bf16.msra.mxu0 0
    %1915 = vmatprep.subr.bf16.mxu0 0
    %1916 = vmatpush1.bf16.msra.mxu0 0
    %1917 = vmatprep.subr.bf16.mxu0 0
    %1918 = vmatpush1.bf16.msra.mxu0 0
    %1919 = vmatprep.mubr.bf16.mxu0 0
    %1920 = vmatmul.mubr.bf16.gmra.mrb[0].mxu0 %v1882
    %v1921 = vpop.f32.mrb[0].mxu0
    %v1922 = vadd.f32 %v1853, %v1921
    %v1923 = vpop.f32.mrb[0].mxu0
    %v1924 = vadd.f32 %v1853, %v1923
    %v1925 = vpop.f32.mrb[0].mxu0
    %v1926 = vadd.f32 %v1858, %v1925
    %v1927 = vpop.f32.mrb[0].mxu0
    %v1928 = vadd.f32 %v1858, %v1927
    %1929 = vmatprep.mubr.bf16.mxu0 0
    %1930 = vmatmul.mubr.bf16.gmra.mrb[0].mxu0 %v1885
    %v1931 = vpop.f32.mrb[0].mxu0
    %v1932 = vadd.f32 %v1863, %v1931
    %v1933 = vpop.f32.mrb[0].mxu0
    %v1934 = vadd.f32 %v1863, %v1933
    %v1935 = vpop.f32.mrb[0].mxu0
    %v1936 = vadd.f32 %v1868, %v1935
    %v1937 = vpop.f32.mrb[0].mxu0
    %v1938 = vadd.f32 %v1868, %v1937
    %1939 = vdwg.mxu0
    %1940 = vmatprep.subr.bf16.mxu0 %v1797
    %1941 = vmatpush1.bf16.msra.mxu0 %v1796
    %1942 = vmatprep.subr.bf16.mxu0 %v1805
    %1943 = vmatpush1.bf16.msra.mxu0 %v1804
    %1944 = vmatprep.subr.bf16.mxu0 %v1813
    %1945 = vmatpush1.bf16.msra.mxu0 %v1812
    %1946 = vmatprep.subr.bf16.mxu0 %v1821
    %1947 = vmatpush1.bf16.msra.mxu0 %v1820
    %1948 = vmatprep.subr.bf16.mxu0 %v1829
    %1949 = vmatpush1.bf16.msra.mxu0 %v1828
    %1950 = vmatprep.subr.bf16.mxu0 %v1837
    %1951 = vmatpush1.bf16.msra.mxu0 %v1836
    %1952 = vmatprep.subr.bf16.mxu0 0
    %1953 = vmatpush1.bf16.msra.mxu0 0
    %1954 = vmatprep.subr.bf16.mxu0 0
    %1955 = vmatpush1.bf16.msra.mxu0 0
    %1956 = vmatprep.subr.bf16.mxu0 0
    %1957 = vmatpush1.bf16.msra.mxu0 0
    %1958 = vmatprep.subr.bf16.mxu0 0
    %1959 = vmatpush1.bf16.msra.mxu0 0
    %1960 = vmatprep.subr.bf16.mxu0 0
    %1961 = vmatpush1.bf16.msra.mxu0 0
    %1962 = vmatprep.subr.bf16.mxu0 0
    %1963 = vmatpush1.bf16.msra.mxu0 0
    %1964 = vmatprep.subr.bf16.mxu0 0
    %1965 = vmatpush1.bf16.msra.mxu0 0
    %1966 = vmatprep.subr.bf16.mxu0 0
    %1967 = vmatpush1.bf16.msra.mxu0 0
    %1968 = vmatprep.subr.bf16.mxu0 0
    %1969 = vmatpush1.bf16.msra.mxu0 0
    %1970 = vmatprep.subr.bf16.mxu0 0
    %1971 = vmatpush1.bf16.msra.mxu0 0
    %1972 = vmatprep.mubr.bf16.mxu0 0
    %1973 = vmatmul.mubr.bf16.gmra.mrb[0].mxu0 %v1882
    %v1974 = vpop.f32.mrb[0].mxu0
    %v1975 = vadd.f32 %v1853, %v1974
    %v1976 = vpop.f32.mrb[0].mxu0
    %v1977 = vadd.f32 %v1853, %v1976
    %v1978 = vpop.f32.mrb[0].mxu0
    %v1979 = vadd.f32 %v1858, %v1978
    %v1980 = vpop.f32.mrb[0].mxu0
    %v1981 = vadd.f32 %v1858, %v1980
    %1982 = vmatprep.mubr.bf16.mxu0 0
    %1983 = vmatmul.mubr.bf16.gmra.mrb[0].mxu0 %v1885
    %v1984 = vpop.f32.mrb[0].mxu0
    %v1985 = vadd.f32 %v1863, %v1984
    %v1986 = vpop.f32.mrb[0].mxu0
    %v1987 = vadd.f32 %v1863, %v1986
    %v1988 = vpop.f32.mrb[0].mxu0
    %v1989 = vadd.f32 %v1868, %v1988
    %v1990 = vpop.f32.mrb[0].mxu0
    %v1991 = vadd.f32 %v1868, %v1990
    %1992 = vdwg.mxu0
    %1993 = vmatprep.subr.bf16.mxu0 %v1799
    %1994 = vmatpush1.bf16.msra.mxu0 %v1798
    %1995 = vmatprep.subr.bf16.mxu0 %v1807
    %1996 = vmatpush1.bf16.msra.mxu0 %v1806
    %1997 = vmatprep.subr.bf16.mxu0 %v1815
    %1998 = vmatpush1.bf16.msra.mxu0 %v1814
    %1999 = vmatprep.subr.bf16.mxu0 %v1823
    %2000 = vmatpush1.bf16.msra.mxu0 %v1822
    %2001 = vmatprep.subr.bf16.mxu0 %v1831
    %2002 = vmatpush1.bf16.msra.mxu0 %v1830
    %2003 = vmatprep.subr.bf16.mxu0 %v1839
    %2004 = vmatpush1.bf16.msra.mxu0 %v1838
    %2005 = vmatprep.subr.bf16.mxu0 0
    %2006 = vmatpush1.bf16.msra.mxu0 0
    %2007 = vmatprep.subr.bf16.mxu0 0
    %2008 = vmatpush1.bf16.msra.mxu0 0
    %2009 = vmatprep.subr.bf16.mxu0 0
    %2010 = vmatpush1.bf16.msra.mxu0 0
    %2011 = vmatprep.subr.bf16.mxu0 0
    %2012 = vmatpush1.bf16.msra.mxu0 0
    %2013 = vmatprep.subr.bf16.mxu0 0
    %2014 = vmatpush1.bf16.msra.mxu0 0
    %2015 = vmatprep.subr.bf16.mxu0 0
    %2016 = vmatpush1.bf16.msra.mxu0 0
    %2017 = vmatprep.subr.bf16.mxu0 0
    %2018 = vmatpush1.bf16.msra.mxu0 0
    %2019 = vmatprep.subr.bf16.mxu0 0
    %2020 = vmatpush1.bf16.msra.mxu0 0
    %2021 = vmatprep.subr.bf16.mxu0 0
    %2022 = vmatpush1.bf16.msra.mxu0 0
    %2023 = vmatprep.subr.bf16.mxu0 0
    %2024 = vmatpush1.bf16.msra.mxu0 0
    %2025 = vmatprep.mubr.bf16.mxu0 0
    %2026 = vmatmul.mubr.bf16.gmra.mrb[0].mxu0 %v1882
    %v2027 = vpop.f32.mrb[0].mxu0
    %v2028 = vadd.f32 %v1853, %v2027
    %v2029 = vpop.f32.mrb[0].mxu0
    %v2030 = vadd.f32 %v1853, %v2029
    %v2031 = vpop.f32.mrb[0].mxu0
    %v2032 = vadd.f32 %v1858, %v2031
    %v2033 = vpop.f32.mrb[0].mxu0
    %v2034 = vadd.f32 %v1858, %v2033
    %2035 = vmatprep.mubr.bf16.mxu0 0
    %2036 = vmatmul.mubr.bf16.gmra.mrb[0].mxu0 %v1885
    %v2037 = vpop.f32.mrb[0].mxu0
    %v2038 = vadd.f32 %v1863, %v2037
    %v2039 = vpop.f32.mrb[0].mxu0
    %v2040 = vadd.f32 %v1863, %v2039
    %v2041 = vpop.f32.mrb[0].mxu0
    %v2042 = vadd.f32 %v1868, %v2041
    %v2043 = vpop.f32.mrb[0].mxu0
    %v2044 = vadd.f32 %v1868, %v2043
    %2045 = vdwg.mxu0
    %2046 = vmatprep.subr.bf16.mxu0 %v1801
    %2047 = vmatpush1.bf16.msra.mxu0 %v1800
    %2048 = vmatprep.subr.bf16.mxu0 %v1809
    %2049 = vmatpush1.bf16.msra.mxu0 %v1808
    %2050 = vmatprep.subr.bf16.mxu0 %v1817
    %2051 = vmatpush1.bf16.msra.mxu0 %v1816
    %2052 = vmatprep.subr.bf16.mxu0 %v1825
    %2053 = vmatpush1.bf16.msra.mxu0 %v1824
    %2054 = vmatprep.subr.bf16.mxu0 %v1833
    %2055 = vmatpush1.bf16.msra.mxu0 %v1832
    %2056 = vmatprep.subr.bf16.mxu0 %v1841
    %2057 = vmatpush1.bf16.msra.mxu0 %v1840
    %2058 = vmatprep.subr.bf16.mxu0 0
    %2059 = vmatpush1.bf16.msra.mxu0 0
    %2060 = vmatprep.subr.bf16.mxu0 0
    %2061 = vmatpush1.bf16.msra.mxu0 0
    %2062 = vmatprep.subr.bf16.mxu0 0
    %2063 = vmatpush1.bf16.msra.mxu0 0
    %2064 = vmatprep.subr.bf16.mxu0 0
    %2065 = vmatpush1.bf16.msra.mxu0 0
    %2066 = vmatprep.subr.bf16.mxu0 0
    %2067 = vmatpush1.bf16.msra.mxu0 0
    %2068 = vmatprep.subr.bf16.mxu0 0
    %2069 = vmatpush1.bf16.msra.mxu0 0
    %2070 = vmatprep.subr.bf16.mxu0 0
    %2071 = vmatpush1.bf16.msra.mxu0 0
    %2072 = vmatprep.subr.bf16.mxu0 0
    %2073 = vmatpush1.bf16.msra.mxu0 0
    %2074 = vmatprep.subr.bf16.mxu0 0
    %2075 = vmatpush1.bf16.msra.mxu0 0
    %2076 = vmatprep.subr.bf16.mxu0 0
    %2077 = vmatpush1.bf16.msra.mxu0 0
    %2078 = vmatprep.mubr.bf16.mxu0 0
    %2079 = vmatmul.mubr.bf16.gmra.mrb[0].mxu0 %v1882
    %v2080 = vpop.f32.mrb[0].mxu0
    %v2081 = vadd.f32 %v1853, %v2080
    %v2082 = vpop.f32.mrb[0].mxu0
    %v2083 = vadd.f32 %v1853, %v2082
    %v2084 = vpop.f32.mrb[0].mxu0
    %v2085 = vadd.f32 %v1858, %v2084
    %v2086 = vpop.f32.mrb[0].mxu0
    %v2087 = vadd.f32 %v1858, %v2086
    %2088 = vmatprep.mubr.bf16.mxu0 0
    %2089 = vmatmul.mubr.bf16.gmra.mrb[0].mxu0 %v1885
    %v2090 = vpop.f32.mrb[0].mxu0
    %v2091 = vadd.f32 %v1863, %v2090
    %v2092 = vpop.f32.mrb[0].mxu0
    %v2093 = vadd.f32 %v1863, %v2092
    %v2094 = vpop.f32.mrb[0].mxu0
    %v2095 = vadd.f32 %v1868, %v2094
    %v2096 = vpop.f32.mrb[0].mxu0
    %v2097 = vadd.f32 %v1868, %v2096
    %2098 = vdwg.mxu0
    %v2099 = vmax.f32 %v1922, 0.0
    %v2100 = vmax.f32 %v1924, 0.0
    %v2101 = vmax.f32 %v1975, 0.0
    %v2102 = vmax.f32 %v1977, 0.0
    %v2103 = vmax.f32 %v2028, 0.0
    %v2104 = vmax.f32 %v2030, 0.0
    %v2105 = vmax.f32 %v2081, 0.0
    %v2106 = vmax.f32 %v2083, 0.0
    %v2107 = vmax.f32 %v1926, 0.0
    %v2108 = vmax.f32 %v1928, 0.0
    %v2109 = vmax.f32 %v1979, 0.0
    %v2110 = vmax.f32 %v1981, 0.0
    %v2111 = vmax.f32 %v2032, 0.0
    %v2112 = vmax.f32 %v2034, 0.0
    %v2113 = vmax.f32 %v2085, 0.0
    %v2114 = vmax.f32 %v2087, 0.0
    %v2115 = vmax.f32 %v1932, 0.0
    %v2116 = vmax.f32 %v1934, 0.0
    %v2117 = vmax.f32 %v1985, 0.0
    %v2118 = vmax.f32 %v1987, 0.0
    %v2119 = vmax.f32 %v2038, 0.0
    %v2120 = vmax.f32 %v2040, 0.0
    %v2121 = vmax.f32 %v2091, 0.0
    %v2122 = vmax.f32 %v2093, 0.0
    %v2123 = vmax.f32 %v1936, 0.0
    %v2124 = vmax.f32 %v1938, 0.0
    %v2125 = vmax.f32 %v1989, 0.0
    %v2126 = vmax.f32 %v1991, 0.0
    %v2127 = vmax.f32 %v2042, 0.0
    %v2128 = vmax.f32 %v2044, 0.0
    %v2129 = vmax.f32 %v2095, 0.0
    %v2130 = vmax.f32 %v2097, 0.0
    %v2131 = vld [vmem:[%s6] sm:$0x1]
    %v2132 = vpack.c.bf16 %v2107, %v2099
    %v2133 = vpack.c.bf16 %v2108, %v2100
    %v2134 = vpack.c.bf16 %v2109, %v2101
    %v2135 = vpack.c.bf16 %v2110, %v2102
    %v2136 = vpack.c.bf16 %v2111, %v2103
    %v2137 = vpack.c.bf16 %v2112, %v2104
    %v2138 = vpack.c.bf16 %v2113, %v2105
    %v2139 = vpack.c.bf16 %v2114, %v2106
    %v2140 = vpack.c.bf16 %v2123, %v2115
    %v2141 = vpack.c.bf16 %v2124, %v2116
    %v2142 = vpack.c.bf16 %v2125, %v2117
    %v2143 = vpack.c.bf16 %v2126, %v2118
    %v2144 = vpack.c.bf16 %v2127, %v2119
    %v2145 = vpack.c.bf16 %v2128, %v2120
    %v2146 = vpack.c.bf16 %v2129, %v2121
    %v2147 = vpack.c.bf16 %v2130, %v2122
    %v2148 = vld [vmem:[%s7] sm:$0x3]
    %2150 = vset.pattern.permute.xlu0 0
    %2151 = vperm.xlu0 %2150, %v2148
    %v2152 = vpop.permute.xlu0 %2151
    %vm2154 = vcmask 261120
    %v2156 = vsel %vm2154, %v2131, 0
    %2158 = vmatprep.subr.bf16.mxu0 %v2133
    %2159 = vmatpush1.bf16.msra.mxu0 %v2132
    %2160 = vmatprep.subr.bf16.mxu0 %v2141
    %2161 = vmatpush1.bf16.msra.mxu0 %v2140
    %2162 = vmatprep.subr.bf16.mxu0 0
    %2163 = vmatpush1.bf16.msra.mxu0 0
    %2164 = vmatprep.subr.bf16.mxu0 0
    %2165 = vmatpush1.bf16.msra.mxu0 0
    %2166 = vmatprep.subr.bf16.mxu0 0
    %2167 = vmatpush1.bf16.msra.mxu0 0
    %2168 = vmatprep.subr.bf16.mxu0 0
    %2169 = vmatpush1.bf16.msra.mxu0 0
    %2170 = vmatprep.subr.bf16.mxu0 0
    %2171 = vmatpush1.bf16.msra.mxu0 0
    %2172 = vmatprep.subr.bf16.mxu0 0
    %2173 = vmatpush1.bf16.msra.mxu0 0
    %2174 = vmatprep.subr.bf16.mxu0 0
    %2175 = vmatpush1.bf16.msra.mxu0 0
    %2176 = vmatprep.subr.bf16.mxu0 0
    %2177 = vmatpush1.bf16.msra.mxu0 0
    %2178 = vmatprep.subr.bf16.mxu0 0
    %2179 = vmatpush1.bf16.msra.mxu0 0
    %2180 = vmatprep.subr.bf16.mxu0 0
    %2181 = vmatpush1.bf16.msra.mxu0 0
    %2182 = vmatprep.subr.bf16.mxu0 0
    %2183 = vmatpush1.bf16.msra.mxu0 0
    %2184 = vmatprep.subr.bf16.mxu0 0
    %2185 = vmatpush1.bf16.msra.mxu0 0
    %2186 = vmatprep.subr.bf16.mxu0 0
    %2187 = vmatpush1.bf16.msra.mxu0 0
    %2188 = vmatprep.subr.bf16.mxu0 0
    %2189 = vmatpush1.bf16.msra.mxu0 0
    %2190 = vmatprep.mubr.bf16.mxu0 0
    %2191 = vmatmul.mubr.bf16.gmra.mrb[0].mxu0 %v2156
    %v2192 = vpop.f32.mrb[0].mxu0
    %v2193 = vadd.f32 %v2152, %v2192
    %v2194 = vpop.f32.mrb[0].mxu0
    %v2195 = vadd.f32 %v2152, %v2194
    %v2196 = vpop.f32.mrb[0].mxu0
    %v2197 = vpop.f32.mrb[0].mxu0
    %2198 = vdwg.mxu0
    %2199 = vmatprep.subr.bf16.mxu0 %v2135
    %2200 = vmatpush1.bf16.msra.mxu0 %v2134
    %2201 = vmatprep.subr.bf16.mxu0 %v2143
    %2202 = vmatpush1.bf16.msra.mxu0 %v2142
    %2203 = vmatprep.subr.bf16.mxu0 0
    %2204 = vmatpush1.bf16.msra.mxu0 0
    %2205 = vmatprep.subr.bf16.mxu0 0
    %2206 = vmatpush1.bf16.msra.mxu0 0
    %2207 = vmatprep.subr.bf16.mxu0 0
    %2208 = vmatpush1.bf16.msra.mxu0 0
    %2209 = vmatprep.subr.bf16.mxu0 0
    %2210 = vmatpush1.bf16.msra.mxu0 0
    %2211 = vmatprep.subr.bf16.mxu0 0
    %2212 = vmatpush1.bf16.msra.mxu0 0
    %2213 = vmatprep.subr.bf16.mxu0 0
    %2214 = vmatpush1.bf16.msra.mxu0 0
    %2215 = vmatprep.subr.bf16.mxu0 0
    %2216 = vmatpush1.bf16.msra.mxu0 0
    %2217 = vmatprep.subr.bf16.mxu0 0
    %2218 = vmatpush1.bf16.msra.mxu0 0
    %2219 = vmatprep.subr.bf16.mxu0 0
    %2220 = vmatpush1.bf16.msra.mxu0 0
    %2221 = vmatprep.subr.bf16.mxu0 0
    %2222 = vmatpush1.bf16.msra.mxu0 0
    %2223 = vmatprep.subr.bf16.mxu0 0
    %2224 = vmatpush1.bf16.msra.mxu0 0
    %2225 = vmatprep.subr.bf16.mxu0 0
    %2226 = vmatpush1.bf16.msra.mxu0 0
    %2227 = vmatprep.subr.bf16.mxu0 0
    %2228 = vmatpush1.bf16.msra.mxu0 0
    %2229 = vmatprep.subr.bf16.mxu0 0
    %2230 = vmatpush1.bf16.msra.mxu0 0
    %2231 = vmatprep.mubr.bf16.mxu0 0
    %2232 = vmatmul.mubr.bf16.gmra.mrb[0].mxu0 %v2156
    %v2233 = vpop.f32.mrb[0].mxu0
    %v2234 = vadd.f32 %v2152, %v2233
    %v2235 = vpop.f32.mrb[0].mxu0
    %v2236 = vadd.f32 %v2152, %v2235
    %v2237 = vpop.f32.mrb[0].mxu0
    %v2238 = vpop.f32.mrb[0].mxu0
    %2239 = vdwg.mxu0
    %2240 = vmatprep.subr.bf16.mxu0 %v2137
    %2241 = vmatpush1.bf16.msra.mxu0 %v2136
    %2242 = vmatprep.subr.bf16.mxu0 %v2145
    %2243 = vmatpush1.bf16.msra.mxu0 %v2144
    %2244 = vmatprep.subr.bf16.mxu0 0
    %2245 = vmatpush1.bf16.msra.mxu0 0
    %2246 = vmatprep.subr.bf16.mxu0 0
    %2247 = vmatpush1.bf16.msra.mxu0 0
    %2248 = vmatprep.subr.bf16.mxu0 0
    %2249 = vmatpush1.bf16.msra.mxu0 0
    %2250 = vmatprep.subr.bf16.mxu0 0
    %2251 = vmatpush1.bf16.msra.mxu0 0
    %2252 = vmatprep.subr.bf16.mxu0 0
    %2253 = vmatpush1.bf16.msra.mxu0 0
    %2254 = vmatprep.subr.bf16.mxu0 0
    %2255 = vmatpush1.bf16.msra.mxu0 0
    %2256 = vmatprep.subr.bf16.mxu0 0
    %2257 = vmatpush1.bf16.msra.mxu0 0
    %2258 = vmatprep.subr.bf16.mxu0 0
    %2259 = vmatpush1.bf16.msra.mxu0 0
    %2260 = vmatprep.subr.bf16.mxu0 0
    %2261 = vmatpush1.bf16.msra.mxu0 0
    %2262 = vmatprep.subr.bf16.mxu0 0
    %2263 = vmatpush1.bf16.msra.mxu0 0
    %2264 = vmatprep.subr.bf16.mxu0 0
    %2265 = vmatpush1.bf16.msra.mxu0 0
    %2266 = vmatprep.subr.bf16.mxu0 0
    %2267 = vmatpush1.bf16.msra.mxu0 0
    %2268 = vmatprep.subr.bf16.mxu0 0
    %2269 = vmatpush1.bf16.msra.mxu0 0
    %2270 = vmatprep.subr.bf16.mxu0 0
    %2271 = vmatpush1.bf16.msra.mxu0 0
    %2272 = vmatprep.mubr.bf16.mxu0 0
    %2273 = vmatmul.mubr.bf16.gmra.mrb[0].mxu0 %v2156
    %v2274 = vpop.f32.mrb[0].mxu0
    %v2275 = vadd.f32 %v2152, %v2274
    %v2276 = vpop.f32.mrb[0].mxu0
    %v2277 = vadd.f32 %v2152, %v2276
    %v2278 = vpop.f32.mrb[0].mxu0
    %v2279 = vpop.f32.mrb[0].mxu0
    %2280 = vdwg.mxu0
    %2281 = vmatprep.subr.bf16.mxu0 %v2139
    %2282 = vmatpush1.bf16.msra.mxu0 %v2138
    %2283 = vmatprep.subr.bf16.mxu0 %v2147
    %2284 = vmatpush1.bf16.msra.mxu0 %v2146
    %2285 = vmatprep.subr.bf16.mxu0 0
    %2286 = vmatpush1.bf16.msra.mxu0 0
    %2287 = vmatprep.subr.bf16.mxu0 0
    %2288 = vmatpush1.bf16.msra.mxu0 0
    %2289 = vmatprep.subr.bf16.mxu0 0
    %2290 = vmatpush1.bf16.msra.mxu0 0
    %2291 = vmatprep.subr.bf16.mxu0 0
    %2292 = vmatpush1.bf16.msra.mxu0 0
    %2293 = vmatprep.subr.bf16.mxu0 0
    %2294 = vmatpush1.bf16.msra.mxu0 0
    %2295 = vmatprep.subr.bf16.mxu0 0
    %2296 = vmatpush1.bf16.msra.mxu0 0
    %2297 = vmatprep.subr.bf16.mxu0 0
    %2298 = vmatpush1.bf16.msra.mxu0 0
    %2299 = vmatprep.subr.bf16.mxu0 0
    %2300 = vmatpush1.bf16.msra.mxu0 0
    %2301 = vmatprep.subr.bf16.mxu0 0
    %2302 = vmatpush1.bf16.msra.mxu0 0
    %2303 = vmatprep.subr.bf16.mxu0 0
    %2304 = vmatpush1.bf16.msra.mxu0 0
    %2305 = vmatprep.subr.bf16.mxu0 0
    %2306 = vmatpush1.bf16.msra.mxu0 0
    %2307 = vmatprep.subr.bf16.mxu0 0
    %2308 = vmatpush1.bf16.msra.mxu0 0
    %2309 = vmatprep.subr.bf16.mxu0 0
    %2310 = vmatpush1.bf16.msra.mxu0 0
    %2311 = vmatprep.subr.bf16.mxu0 0
    %2312 = vmatpush1.bf16.msra.mxu0 0
    %2313 = vmatprep.mubr.bf16.mxu0 0
    %2314 = vmatmul.mubr.bf16.gmra.mrb[0].mxu0 %v2156
    %v2315 = vpop.f32.mrb[0].mxu0
    %v2316 = vadd.f32 %v2152, %v2315
    %v2317 = vpop.f32.mrb[0].mxu0
    %v2318 = vadd.f32 %v2152, %v2317
    %v2319 = vpop.f32.mrb[0].mxu0
    %v2320 = vpop.f32.mrb[0].mxu0
    %2321 = vdwg.mxu0
    %v2322 = vmax.f32 %v2193, 0.0
    %v2323 = vmax.f32 %v2195, 0.0
    %v2324 = vmax.f32 %v2234, 0.0
    %v2325 = vmax.f32 %v2236, 0.0
    %v2326 = vmax.f32 %v2275, 0.0
    %v2327 = vmax.f32 %v2277, 0.0
    %v2328 = vmax.f32 %v2316, 0.0
    %v2329 = vmax.f32 %v2318, 0.0
    %v2338 = vcombine.low %v2322, %v2323
    %v2339 = vcombine.low %v2324, %v2325
    %v2341 = vunpack.c.l.s4 1983009808
    %v2342 = vunpack.c.0.s8 %v2341
    %v2343 = vlaneseq
    %v2344 = vshrl.u32 %v2343, 7
    %v2345 = vsub.s32 %v2342, %v2344
    %v2346 = vrot.slane %v2338, %v2345
    %v2348 = vunpack.c.l.s4 1983009808
    %v2349 = vunpack.c.0.s8 %v2348
    %v2350 = vlaneseq
    %v2351 = vshrl.u32 %v2350, 7
    %v2352 = vsub.s32 %v2349, %v2351
    %v2353 = vrot.slane %v2339, %v2352
    %v2354 = vcombine.low %v2346, %v2353
    %v2355 = vcombine.low %v2326, %v2327
    %v2356 = vcombine.low %v2328, %v2329
    %v2358 = vunpack.c.l.s4 1983009808
    %v2359 = vunpack.c.0.s8 %v2358
    %v2360 = vlaneseq
    %v2361 = vshrl.u32 %v2360, 7
    %v2362 = vsub.s32 %v2359, %v2361
    %v2363 = vrot.slane %v2355, %v2362
    %v2365 = vunpack.c.l.s4 1983009808
    %v2366 = vunpack.c.0.s8 %v2365
    %v2367 = vlaneseq
    %v2368 = vshrl.u32 %v2367, 7
    %v2369 = vsub.s32 %v2366, %v2368
    %v2370 = vrot.slane %v2356, %v2369
    %v2371 = vcombine.low %v2363, %v2370
    %2374 = vst [vmem:[#allocation2] sm:$0xff] %v2354
    %2375 = vst [vmem:[#allocation2 + $0x8] sm:$0xff] %v2371
    %s2376 = smul.u32 0, 1024
    %v2377 = vstv %s2376
    %v2378 = vadd.s32 %v102, %v2377
    %v2379 = vadd.s32 %v1353, %v2377
    %v2380 = vadd.s32 %v1354, %v2377
    %v2381 = vadd.s32 %v1355, %v2377
    %v2382 = vadd.s32 %v1356, %v2377
    %v2383 = vadd.s32 %v1357, %v2377
    %v2384 = vadd.s32 %v1358, %v2377
    %v2385 = vadd.s32 %v1359, %v2377
    %vm2386 = vcmp.lt.s32.totalorder %v2378, 1024
    %vm2387 = vcmp.lt.s32.totalorder %v2379, 1024
    %vm2388 = vcmp.lt.s32.totalorder %v2380, 1024
    %vm2389 = vcmp.lt.s32.totalorder %v2381, 1024
    %vm2390 = vcmp.lt.s32.totalorder %v2382, 1024
    %vm2391 = vcmp.lt.s32.totalorder %v2383, 1024
    %vm2392 = vcmp.lt.s32.totalorder %v2384, 1024
    %vm2393 = vcmp.lt.s32.totalorder %v2385, 1024
    %v2394 = vsel %vm2386, 1, 0
    %v2395 = vsel %vm2387, 1, 0
    %v2396 = vsel %vm2388, 1, 0
    %v2397 = vsel %vm2389, 1, 0
    %v2398 = vsel %vm2390, 1, 0
    %v2399 = vsel %vm2391, 1, 0
    %v2400 = vsel %vm2392, 1, 0
    %v2401 = vsel %vm2393, 1, 0
    %v2402 = vcvt.s32.f32 %v2394
    %v2403 = vcvt.s32.f32 %v2395
    %v2404 = vcvt.s32.f32 %v2396
    %v2405 = vcvt.s32.f32 %v2397
    %v2406 = vcvt.s32.f32 %v2398
    %v2407 = vcvt.s32.f32 %v2399
    %v2408 = vcvt.s32.f32 %v2400
    %v2409 = vcvt.s32.f32 %v2401
    %v2410 = vld [vmem:[%s1] sm:$0xff]
    %v2411 = vld [vmem:[%s1 + $0x8] sm:$0xff]
    %v2412 = vld [vmem:[%s8] sm:$0x3]
    %2414 = vset.pattern.permute.xlu0 0
    %2415 = vperm.xlu0 %2414, %v2412
    %v2416 = vpop.permute.xlu0 %2415
    %v2418 = vunpack.c.l.s4 269488144
    %v2419 = vunpack.c.0.s8 %v2418
    %v2420 = vlaneseq
    %v2421 = vshrl.u32 %v2420, 7
    %v2422 = vsub.s32 %v2419, %v2421
    %v2423 = vrot.slane %v2416, %v2422
    %v2425 = vsub.f32 %v2410, %v2423
    %v2426 = vsub.f32 %v2411, %v2423
    %v2427 = vld [vmem:[%s9] sm:$0x3]
    %2429 = vset.pattern.permute.xlu0 0
    %2430 = vperm.xlu0 %2429, %v2427
    %v2431 = vpop.permute.xlu0 %2430
    %v2433 = vunpack.c.l.s4 269488144
    %v2434 = vunpack.c.0.s8 %v2433
    %v2435 = vlaneseq
    %v2436 = vshrl.u32 %v2435, 7
    %v2437 = vsub.s32 %v2434, %v2436
    %v2438 = vrot.slane %v2431, %v2437
    %v2440 = vmul.f32 %v2425, %v2438
    %v2441 = vmul.f32 %v2426, %v2438
    %v2444 = vcombine.high %v2440, %v2440
    %v2446 = vunpack.c.l.s4 1983009808
    %v2447 = vunpack.c.0.s8 %v2446
    %v2448 = vlaneseq
    %v2449 = vshrl.u32 %v2448, 7
    %v2450 = vsub.s32 %v2447, %v2449
    %v2451 = vrot.slane %v2440, %v2450
    %v2453 = vunpack.c.l.s4 1983009808
    %v2454 = vunpack.c.0.s8 %v2453
    %v2455 = vlaneseq
    %v2456 = vshrl.u32 %v2455, 7
    %v2457 = vsub.s32 %v2454, %v2456
    %v2458 = vrot.slane %v2444, %v2457
    %v2459 = vcombine.high %v2451, %v2451
    %v2460 = vcombine.high %v2458, %v2458
    %v2461 = vcombine.high %v2441, %v2441
    %v2463 = vunpack.c.l.s4 1983009808
    %v2464 = vunpack.c.0.s8 %v2463
    %v2465 = vlaneseq
    %v2466 = vshrl.u32 %v2465, 7
    %v2467 = vsub.s32 %v2464, %v2466
    %v2468 = vrot.slane %v2441, %v2467
    %v2470 = vunpack.c.l.s4 1983009808
    %v2471 = vunpack.c.0.s8 %v2470
    %v2472 = vlaneseq
    %v2473 = vshrl.u32 %v2472, 7
    %v2474 = vsub.s32 %v2471, %v2473
    %v2475 = vrot.slane %v2461, %v2474
    %v2476 = vcombine.high %v2468, %v2468
    %v2477 = vcombine.high %v2475, %v2475
    %v2486 = vsub.f32 %v2322, %v2451
    %v2487 = vsub.f32 %v2323, %v2459
    %v2488 = vsub.f32 %v2324, %v2458
    %v2489 = vsub.f32 %v2325, %v2460
    %v2490 = vsub.f32 %v2326, %v2468
    %v2491 = vsub.f32 %v2327, %v2476
    %v2492 = vsub.f32 %v2328, %v2475
    %v2493 = vsub.f32 %v2329, %v2477
    %v2494 = vmul.f32 %v2486, %v2486
    %v2495 = vmul.f32 %v2487, %v2487
    %v2496 = vmul.f32 %v2488, %v2488
    %v2497 = vmul.f32 %v2489, %v2489
    %v2498 = vmul.f32 %v2490, %v2490
    %v2499 = vmul.f32 %v2491, %v2491
    %v2500 = vmul.f32 %v2492, %v2492
    %v2501 = vmul.f32 %v2493, %v2493
    %v2502 = vmul.f32 %v2494, %v2402
    %v2503 = vmul.f32 %v2495, %v2403
    %v2504 = vmul.f32 %v2496, %v2404
    %v2505 = vmul.f32 %v2497, %v2405
    %v2506 = vmul.f32 %v2498, %v2406
    %v2507 = vmul.f32 %v2499, %v2407
    %v2508 = vmul.f32 %v2500, %v2408
    %v2509 = vmul.f32 %v2501, %v2409
    %v2510 = vsel %vm159, %v2502, 0.0
    %v2511 = vsel %vm159, %v2503, 0.0
    %v2512 = vadd.f32 %v2510, %v2511
    %v2513 = vsel %vm159, %v2504, 0.0
    %v2514 = vadd.f32 %v2512, %v2513
    %v2515 = vsel %vm159, %v2505, 0.0
    %v2516 = vadd.f32 %v2514, %v2515
    %v2517 = vsel %vm159, %v2506, 0.0
    %v2518 = vadd.f32 %v2516, %v2517
    %v2519 = vsel %vm159, %v2507, 0.0
    %v2520 = vadd.f32 %v2518, %v2519
    %v2521 = vsel %vm159, %v2508, 0.0
    %v2522 = vadd.f32 %v2520, %v2521
    %v2523 = vsel %vm159, %v2509, 0.0
    %v2524 = vadd.f32 %v2522, %v2523
    %2525 = vadd.xlane.f32.xlu0 %v2524
    %v2526 = vpop.xlane.xlu0 %2525
    %v2527 = vrot.slane %v2526, 4
    %v2528 = vadd.f32 %v2526, %v2527
    %v2529 = vrot.slane %v2528, 2
    %v2530 = vadd.f32 %v2528, %v2529
    %v2531 = vrot.slane %v2530, 1
    %v2532 = vadd.f32 %v2530, %v2531
    %s2533 = vtos %v2532
    %v2534 = vstv %s2533
    %v2535 = vadd.f32 %v2534, 0.0
    %2536 = vst [vmem:[%s11] sm:$0x1] %v2535
    // Predicated region
    $region42: #{tcn_forward.1} parent=1 // pred_check
      _
    $region43: #{tcn_forward.1} parent=1 // pred_check_branch
      %2538 = sbr.rel (0) target = $region45
    $region44: #{tcn_forward.1} parent=1 // pred_region
      %s2540 = ssub.s32 256, 256
      %2541 = vsyncadd [#allocation3], %s2540
      %s2543 = sshll.u32 [#allocation2], 4
      %s2544 = int_to_ptr.vmem [resolvable:$true] %s2543
      %2546 = dma.vmem_to_hbm [thread:$0]  %s2544, 256, %s10, [#allocation3]
    $region45: #{tcn_forward.1} parent=1 // pred_fallthru
      _
    // Predicated region
    $region46: #{tcn_forward.1} parent=1 // pred_check
      _
    $region47: #{tcn_forward.1} parent=1 // pred_check_branch
      %2548 = sbr.rel (0) target = $region49
    $region48: #{tcn_forward.1} parent=1 // pred_region
      _
    $region49: #{tcn_forward.1} parent=1 // pred_fallthru
      _
    // Predicated region
    $region50: #{tcn_forward.1} parent=1 // pred_check
      _
    $region51: #{tcn_forward.1} parent=1 // pred_check_branch
      %2550 = sbr.rel (0) target = $region53
    $region52: #{tcn_forward.1} parent=1 // pred_region
      %2551 = dma.done [#allocation3], 256
    $region53: #{tcn_forward.1} parent=1 // pred_fallthru
      _
    // Predicated region
    $region54: #{tcn_forward.1} parent=1 // pred_check
      _
    $region55: #{tcn_forward.1} parent=1 // pred_check_branch
      %2553 = sbr.rel (0) target = $region57
    $region56: #{tcn_forward.1} parent=1 // pred_region
      _
    $region57: #{tcn_forward.1} parent=1 // pred_fallthru
      _
    %2554 = vsyncpa [#allocation3], 1

</llo_original>
